<compile_context>
chip_gen: v7x
topology: tpu7x:2x2x1
jax: 0.10.0
libtpu: 0.0.40
codegen_flags: <defaults>
</compile_context>

<pallas_src>
import functools
import math

import jax
import jax.numpy as jnp
from jax.experimental import pallas as pl
from jax.experimental.pallas import tpu as pltpu


# ----------------------------- in-kernel helpers -----------------------------

def _erf_poly(x):
    # Abramowitz & Stegun 7.1.26 (max abs error ~1.5e-7); divide goes to the EUP.
    p = 0.3275911
    a1, a2, a3, a4, a5 = 0.254829592, -0.284496736, 1.421413741, -1.453152027, 1.061405429
    sgn = jnp.where(x >= 0.0, 1.0, -1.0)
    ax = jnp.abs(x)
    t = pl.reciprocal(1.0 + p * ax, approx=True)
    poly = ((((a5 * t + a4) * t + a3) * t + a2) * t + a1) * t
    return sgn * (1.0 - poly * jnp.exp(-ax * ax))


def _gelu_exact(x):
    # matches torch.nn.functional.gelu (default erf form)
    return 0.5 * x * (1.0 + _erf_poly(x * (1.0 / math.sqrt(2.0))))


def _layernorm(x, gamma, beta, eps=1e-5):
    mu = jnp.mean(x, axis=-1, keepdims=True)
    xc = x - mu
    var = jnp.mean(xc * xc, axis=-1, keepdims=True)
    return xc * jax.lax.rsqrt(var + eps) * gamma + beta


def _linear(x_bf16, w_ref, b_ref):
    # y = x @ W^T + b   (W in PyTorch (out, in) convention; bf16 operands, f32 accumulate)
    y = jax.lax.dot_general(x_bf16, w_ref[...], (((1,), (1,)), ((), ())),
                            preferred_element_type=jnp.float32)
    return y + b_ref[...]


# --------------------------------- kernel ------------------------------------

def bert_block_kernel(x_ref,
                      wqkv_ref, bqkv_ref, woh_ref, bo_ref,
                      g1_ref, be1_ref,
                      w1_ref, b1_ref, w2_ref, b2_ref,
                      g2_ref, be2_ref,
                      out_ref,
                      *, num_heads, head_size):
    bt, S, H = x_ref.shape
    M = bt * S
    hs = head_size

    x = x_ref[...].reshape(M, H)                 # f32 residual path, batch folded into M
    xb = x.astype(jnp.bfloat16)

    # ---- fused QKV projection: one lane-dense (M, 3H) matmul ----
    qkv = _linear(xb, wqkv_ref, bqkv_ref)        # f32 (M, 3H)

    # ---- head split: (M, 3H) -> (num_heads*bt, S, hs) bf16, g = h*bt + b ----
    # Static lane slices are gathered once into a head-batched tensor; every attention
    # matmul below is a single batched dot_general (no per-head matmul loop, no concat).
    def heads(base):
        th = jnp.stack([qkv[:, base + h * hs: base + (h + 1) * hs]
                        for h in range(num_heads)], axis=0)        # (NH, M, hs) f32
        # row-major, tile-aligned reshape (NH, bt*S, hs) -> (NH*bt, S, hs)
        return th.reshape(num_heads * bt, S, hs).astype(jnp.bfloat16)

    qh = heads(0)
    kh = heads(H)
    vh = heads(2 * H)

    # ---- batched attention: scores (G,S,S), softmax over keys (lane axis), P @ V ----
    scale = 1.0 / math.sqrt(hs)
    scores = jax.lax.dot_general(qh, kh, (((2,), (2,)), ((0,), (0,))),
                                 preferred_element_type=jnp.float32) * scale
    smax = jnp.max(scores, axis=-1, keepdims=True)
    e = jnp.exp(scores - smax)
    denom = jnp.sum(e, axis=-1, keepdims=True)
    p = e * pl.reciprocal(denom, approx=True)
    comb = jax.lax.dot_general(p.astype(jnp.bfloat16), vh,
                               (((2,), (1,)), ((0,), (0,))),
                               preferred_element_type=jnp.float32)  # (G, S, hs)

    # ---- output projection without a head concat:
    #      out[m, o] = sum_h sum_l comb[h, m, l] * Wo[o, h*hs + l]
    comb_h = comb.reshape(num_heads, M, hs).astype(jnp.bfloat16)    # (NH, M, hs)
    proj = jax.lax.dot_general(comb_h, woh_ref[...],
                               (((2,), (1,)), ((0,), (0,))),
                               preferred_element_type=jnp.float32)  # (NH, M, H)
    attn_out = proj[0]
    for h in range(1, num_heads):                # small major-axis sum over heads
        attn_out = attn_out + proj[h]
    attn_out = attn_out + bo_ref[...]

    # ---- residual + layernorm 1 (f32) ----
    y1 = _layernorm(x + attn_out, g1_ref[...], be1_ref[...])

    # ---- MLP: bf16 matmuls, f32 accumulation, f32 exact GELU ----
    h1 = _gelu_exact(_linear(y1.astype(jnp.bfloat16), w1_ref, b1_ref))
    mlp_out = _linear(h1.astype(jnp.bfloat16), w2_ref, b2_ref)

    # TODO(synk): nn.Dropout is identity here (eval-mode semantics; no RNG-matched train dropout).
    out_ref[...] = _layernorm(mlp_out + y1, g2_ref[...], be2_ref[...]).reshape(bt, S, H)


# --------------------------------- wrapper -----------------------------------

def bert_block(x, params, num_heads, *, block_b=None):
    B, S, H = x.shape
    I = params["w1"].shape[0]
    hs = H // num_heads
    if block_b is None:
        block_b = B
    assert B % block_b == 0
    grid_b = B // block_b

    bf = jnp.bfloat16
    # Pre-cast / pre-pack the matmul weights once (outside the kernel):
    wqkv = jnp.concatenate([params["wq"], params["wk"], params["wv"]], axis=0).astype(bf)  # (3H, H)
    bqkv = jnp.concatenate([params["bq"], params["bk"], params["bv"]], axis=1)             # (1, 3H) f32
    woh = params["wo"].T.reshape(num_heads, hs, H).astype(bf)                              # (NH, hs, H)
    w1 = params["w1"].astype(bf)
    w2 = params["w2"].astype(bf)

    def const(shape):
        zero = (0,) * len(shape)
        return pl.BlockSpec(shape, lambda i, _z=zero: _z)

    in_specs = [
        pl.BlockSpec((block_b, S, H), lambda i: (i, 0, 0)),   # x
        const((3 * H, H)), const((1, 3 * H)),                 # fused QKV weight / bias
        const((num_heads, hs, H)), const((1, H)),             # head-reshaped Wo / bo
        const((1, H)), const((1, H)),                         # ln1 gamma / beta
        const((I, H)), const((1, I)),                         # w1 / b1
        const((H, I)), const((1, H)),                         # w2 / b2
        const((1, H)), const((1, H)),                         # ln2 gamma / beta
    ]

    kernel = functools.partial(bert_block_kernel, num_heads=num_heads, head_size=hs)

    return pl.pallas_call(
        kernel,
        out_shape=jax.ShapeDtypeStruct((B, S, H), jnp.float32),
        grid_spec=pltpu.PrefetchScalarGridSpec(
            num_scalar_prefetch=0,
            grid=(grid_b,),
            in_specs=in_specs,
            out_specs=pl.BlockSpec((block_b, S, H), lambda i: (i, 0, 0)),
        ),
        compiler_params=pltpu.CompilerParams(
            dimension_semantics=("parallel",),       # batches independent -> v7x megacore
            vmem_limit_bytes=32 * 1024 * 1024,
        ),
    )(x, wqkv, bqkv, woh, params["bo"],
      params["g1"], params["be1"],
      w1, params["b1"], w2, params["b2"],
      params["g2"], params["be2"])


# --------------------------- pure-JAX reference -------------------------------

def bert_block_ref(x, params, num_heads):
    H = x.shape[-1]
    hs = H // num_heads

    def lin(v, w, b):
        return v @ w.T + b[0]

    q = lin(x, params["wq"], params["bq"])
    k = lin(x, params["wk"], params["bk"])
    v = lin(x, params["wv"], params["bv"])
    qh = q.reshape(*q.shape[:-1], num_heads, hs).transpose(0, 2, 1, 3)   # b h q l
    kh = k.reshape(*k.shape[:-1], num_heads, hs).transpose(0, 2, 1, 3)
    vh = v.reshape(*v.shape[:-1], num_heads, hs).transpose(0, 2, 1, 3)
    scores = jnp.einsum("bhql,bhkl->bhkq", qh, kh) / math.sqrt(hs)
    attn = jax.nn.softmax(scores, axis=-2)
    comb = jnp.einsum("bhkl,bhkq->bhql", vh, attn)
    comb = comb.transpose(0, 2, 1, 3).reshape(*x.shape)
    attn_out = lin(comb, params["wo"], params["bo"])

    def ln(y, g, b, eps=1e-5):
        mu = y.mean(-1, keepdims=True)
        var = ((y - mu) ** 2).mean(-1, keepdims=True)
        return (y - mu) / jnp.sqrt(var + eps) * g[0] + b[0]

    y1 = ln(x + attn_out, params["g1"], params["be1"])
    h1 = lin(y1, params["w1"], params["b1"])
    h1 = 0.5 * h1 * (1.0 + jax.scipy.special.erf(h1 / math.sqrt(2.0)))   # exact gelu
    mlp_out = lin(h1, params["w2"], params["b2"])
    return ln(mlp_out + y1, params["g2"], params["be2"])


# ----------------------------------- main -------------------------------------

if __name__ == "__main__":
    B, S, H, I, NH = 2, 8, 32, 64, 4

    key = jax.random.PRNGKey(0)
    ks = jax.random.split(key, 17)

    def w(k, shape, scale=0.05):
        return (scale * jax.random.normal(k, shape)).astype(jnp.float32)

    params = {
        "wq": w(ks[0], (H, H)),  "bq": w(ks[1], (1, H)),
        "wk": w(ks[2], (H, H)),  "bk": w(ks[3], (1, H)),
        "wv": w(ks[4], (H, H)),  "bv": w(ks[5], (1, H)),
        "wo": w(ks[6], (H, H)),  "bo": w(ks[7], (1, H)),
        "g1": jnp.ones((1, H), jnp.float32) + w(ks[8], (1, H), 0.01),
        "be1": w(ks[9], (1, H), 0.01),
        "w1": w(ks[10], (I, H)), "b1": w(ks[11], (1, I)),
        "w2": w(ks[12], (H, I)), "b2": w(ks[13], (1, H)),
        "g2": jnp.ones((1, H), jnp.float32) + w(ks[14], (1, H), 0.01),
        "be2": w(ks[15], (1, H), 0.01),
    }

    x = jax.random.normal(ks[16], (B, S, H), dtype=jnp.float32)

    out = jax.block_until_ready(bert_block(x, params, NH))
    ref = jax.block_until_ready(bert_block_ref(x, params, NH))

    max_err = float(jnp.max(jnp.abs(out - ref)))
    assert out.shape == (B, S, H)
    # bf16 matmul operands (with f32 accumulation) give O(1e-3..1e-2) abs error on the
    # unit-scale LayerNorm output; softmax/LayerNorm/GELU/residuals stay in f32.
    assert max_err < 2e-2, f"mismatch vs reference: {max_err}"

    print("KERNEL_OK")
</pallas_src>

<mosaic_0001>
module attributes {stable_mosaic.version = 11 : i64} {
  func.func @bert_block_kernel(%arg0: i32, %arg1: memref<2x8x32xf32, #tpu.memory_space<vmem>>, %arg2: memref<96x32xbf16, #tpu.memory_space<vmem>>, %arg3: memref<1x96xf32, #tpu.memory_space<vmem>>, %arg4: memref<4x8x32xbf16, #tpu.memory_space<vmem>>, %arg5: memref<1x32xf32, #tpu.memory_space<vmem>>, %arg6: memref<1x32xf32, #tpu.memory_space<vmem>>, %arg7: memref<1x32xf32, #tpu.memory_space<vmem>>, %arg8: memref<64x32xbf16, #tpu.memory_space<vmem>>, %arg9: memref<1x64xf32, #tpu.memory_space<vmem>>, %arg10: memref<32x64xbf16, #tpu.memory_space<vmem>>, %arg11: memref<1x32xf32, #tpu.memory_space<vmem>>, %arg12: memref<1x32xf32, #tpu.memory_space<vmem>>, %arg13: memref<1x32xf32, #tpu.memory_space<vmem>>, %arg14: memref<2x8x32xf32, #tpu.memory_space<vmem>>) attributes {dimension_semantics = [#tpu.dimension_semantics<parallel>], iteration_bounds = array<i64: 1>, scalar_prefetch = 0 : i64, scratch_operands = 0 : i64, tpu.core_type = #tpu.core_type<tc>, window_params = [{transform_indices = @transform_0, window_bounds = array<i64: 2, 8, 32>}, {pipeline_mode = #tpu.pipeline_mode<synchronous>, transform_indices = @transform_1, window_bounds = array<i64: 96, 32>}, {pipeline_mode = #tpu.pipeline_mode<synchronous>, transform_indices = @transform_2, window_bounds = array<i64: 1, 96>}, {pipeline_mode = #tpu.pipeline_mode<synchronous>, transform_indices = @transform_3, window_bounds = array<i64: 4, 8, 32>}, {pipeline_mode = #tpu.pipeline_mode<synchronous>, transform_indices = @transform_4, window_bounds = array<i64: 1, 32>}, {pipeline_mode = #tpu.pipeline_mode<synchronous>, transform_indices = @transform_5, window_bounds = array<i64: 1, 32>}, {pipeline_mode = #tpu.pipeline_mode<synchronous>, transform_indices = @transform_6, window_bounds = array<i64: 1, 32>}, {pipeline_mode = #tpu.pipeline_mode<synchronous>, transform_indices = @transform_7, window_bounds = array<i64: 64, 32>}, {pipeline_mode = #tpu.pipeline_mode<synchronous>, transform_indices = @transform_8, window_bounds = array<i64: 1, 64>}, {pipeline_mode = #tpu.pipeline_mode<synchronous>, transform_indices = @transform_9, window_bounds = array<i64: 32, 64>}, {pipeline_mode = #tpu.pipeline_mode<synchronous>, transform_indices = @transform_10, window_bounds = array<i64: 1, 32>}, {pipeline_mode = #tpu.pipeline_mode<synchronous>, transform_indices = @transform_11, window_bounds = array<i64: 1, 32>}, {pipeline_mode = #tpu.pipeline_mode<synchronous>, transform_indices = @transform_12, window_bounds = array<i64: 1, 32>}, {transform_indices = @transform_13, window_bounds = array<i64: 2, 8, 32>}]} {
    %c0 = arith.constant 0 : index
    %c0_0 = arith.constant 0 : index
    %c0_1 = arith.constant 0 : index
    %0 = vector.load %arg1[%c0, %c0_0, %c0_1] : memref<2x8x32xf32, #tpu.memory_space<vmem>>, vector<2x8x32xf32>
    %1 = vector.shape_cast %0 : vector<2x8x32xf32> to vector<16x32xf32>
    %2 = arith.truncf %1 : vector<16x32xf32> to vector<16x32xbf16>
    %c0_2 = arith.constant 0 : index
    %c0_3 = arith.constant 0 : index
    %3 = vector.load %arg2[%c0_2, %c0_3] : memref<96x32xbf16, #tpu.memory_space<vmem>>, vector<96x32xbf16>
    %cst = arith.constant dense<0.000000e+00> : vector<16x96xf32>
    %4 = tpu.matmul %2, %3, %cst {dimension_numbers = #tpu.dot_dimension_numbers<[1], [1], [0], [0], [0, 0, 1, 0], [], []>} : vector<16x32xbf16>, vector<96x32xbf16>, vector<16x96xf32> -> vector<16x96xf32>
    %c0_4 = arith.constant 0 : index
    %c0_5 = arith.constant 0 : index
    %5 = vector.load %arg3[%c0_4, %c0_5] : memref<1x96xf32, #tpu.memory_space<vmem>>, vector<1x96xf32>
    %6 = vector.broadcast %5 : vector<1x96xf32> to vector<16x96xf32>
    %7 = arith.addf %4, %6 : vector<16x96xf32>
    %8 = vector.extract_strided_slice %7 {offsets = [0, 0], sizes = [16, 8], strides = [1, 1]} : vector<16x96xf32> to vector<16x8xf32>
    %9 = vector.extract_strided_slice %7 {offsets = [0, 8], sizes = [16, 8], strides = [1, 1]} : vector<16x96xf32> to vector<16x8xf32>
    %10 = vector.extract_strided_slice %7 {offsets = [0, 16], sizes = [16, 8], strides = [1, 1]} : vector<16x96xf32> to vector<16x8xf32>
    %11 = vector.extract_strided_slice %7 {offsets = [0, 24], sizes = [16, 8], strides = [1, 1]} : vector<16x96xf32> to vector<16x8xf32>
    %12 = vector.shape_cast %8 : vector<16x8xf32> to vector<1x16x8xf32>
    %13 = vector.shape_cast %9 : vector<16x8xf32> to vector<1x16x8xf32>
    %14 = vector.shape_cast %10 : vector<16x8xf32> to vector<1x16x8xf32>
    %15 = vector.shape_cast %11 : vector<16x8xf32> to vector<1x16x8xf32>
    %16 = tpu.concatenate %12, %13, %14, %15 in 0 : vector<1x16x8xf32>, vector<1x16x8xf32>, vector<1x16x8xf32>, vector<1x16x8xf32> -> vector<4x16x8xf32>
    %17 = vector.shape_cast %16 : vector<4x16x8xf32> to vector<8x8x8xf32>
    %18 = arith.truncf %17 : vector<8x8x8xf32> to vector<8x8x8xbf16>
    %19 = vector.extract_strided_slice %7 {offsets = [0, 32], sizes = [16, 8], strides = [1, 1]} : vector<16x96xf32> to vector<16x8xf32>
    %20 = vector.extract_strided_slice %7 {offsets = [0, 40], sizes = [16, 8], strides = [1, 1]} : vector<16x96xf32> to vector<16x8xf32>
    %21 = vector.extract_strided_slice %7 {offsets = [0, 48], sizes = [16, 8], strides = [1, 1]} : vector<16x96xf32> to vector<16x8xf32>
    %22 = vector.extract_strided_slice %7 {offsets = [0, 56], sizes = [16, 8], strides = [1, 1]} : vector<16x96xf32> to vector<16x8xf32>
    %23 = vector.shape_cast %19 : vector<16x8xf32> to vector<1x16x8xf32>
    %24 = vector.shape_cast %20 : vector<16x8xf32> to vector<1x16x8xf32>
    %25 = vector.shape_cast %21 : vector<16x8xf32> to vector<1x16x8xf32>
    %26 = vector.shape_cast %22 : vector<16x8xf32> to vector<1x16x8xf32>
    %27 = tpu.concatenate %23, %24, %25, %26 in 0 : vector<1x16x8xf32>, vector<1x16x8xf32>, vector<1x16x8xf32>, vector<1x16x8xf32> -> vector<4x16x8xf32>
    %28 = vector.shape_cast %27 : vector<4x16x8xf32> to vector<8x8x8xf32>
    %29 = arith.truncf %28 : vector<8x8x8xf32> to vector<8x8x8xbf16>
    %30 = vector.extract_strided_slice %7 {offsets = [0, 64], sizes = [16, 8], strides = [1, 1]} : vector<16x96xf32> to vector<16x8xf32>
    %31 = vector.extract_strided_slice %7 {offsets = [0, 72], sizes = [16, 8], strides = [1, 1]} : vector<16x96xf32> to vector<16x8xf32>
    %32 = vector.extract_strided_slice %7 {offsets = [0, 80], sizes = [16, 8], strides = [1, 1]} : vector<16x96xf32> to vector<16x8xf32>
    %33 = vector.extract_strided_slice %7 {offsets = [0, 88], sizes = [16, 8], strides = [1, 1]} : vector<16x96xf32> to vector<16x8xf32>
    %34 = vector.shape_cast %30 : vector<16x8xf32> to vector<1x16x8xf32>
    %35 = vector.shape_cast %31 : vector<16x8xf32> to vector<1x16x8xf32>
    %36 = vector.shape_cast %32 : vector<16x8xf32> to vector<1x16x8xf32>
    %37 = vector.shape_cast %33 : vector<16x8xf32> to vector<1x16x8xf32>
    %38 = tpu.concatenate %34, %35, %36, %37 in 0 : vector<1x16x8xf32>, vector<1x16x8xf32>, vector<1x16x8xf32>, vector<1x16x8xf32> -> vector<4x16x8xf32>
    %39 = vector.shape_cast %38 : vector<4x16x8xf32> to vector<8x8x8xf32>
    %40 = arith.truncf %39 : vector<8x8x8xf32> to vector<8x8x8xbf16>
    %cst_6 = arith.constant dense<0.000000e+00> : vector<8x8x8xf32>
    %41 = tpu.matmul %18, %29, %cst_6 {dimension_numbers = #tpu.dot_dimension_numbers<[2], [2], [1], [1], [0, 0, 0, 1, 1, 1], [0], [0]>} : vector<8x8x8xbf16>, vector<8x8x8xbf16>, vector<8x8x8xf32> -> vector<8x8x8xf32>
    %cst_7 = arith.constant 0.353553385 : f32
    %42 = vector.broadcast %cst_7 : f32 to vector<8x8x8xf32>
    %43 = arith.mulf %41, %42 : vector<8x8x8xf32>
    %cst_8 = arith.constant dense<0xFF800000> : vector<8x8xf32>
    %44 = vector.multi_reduction <maximumf>, %43, %cst_8 [2] : vector<8x8x8xf32> to vector<8x8xf32>
    %45 = vector.shape_cast %44 : vector<8x8xf32> to vector<8x8x1xf32>
    %46 = vector.broadcast %45 : vector<8x8x1xf32> to vector<8x8x8xf32>
    %47 = arith.subf %43, %46 : vector<8x8x8xf32>
    %48 = math.exp %47 : vector<8x8x8xf32>
    %cst_9 = arith.constant dense<0.000000e+00> : vector<8x8xf32>
    %49 = vector.multi_reduction <add>, %48, %cst_9 [2] : vector<8x8x8xf32> to vector<8x8xf32>
    %50 = vector.shape_cast %49 : vector<8x8xf32> to vector<8x8x1xf32>
    %51 = tpu.reciprocal %50 {approx = true} : vector<8x8x1xf32> -> vector<8x8x1xf32>
    %52 = vector.broadcast %51 : vector<8x8x1xf32> to vector<8x8x8xf32>
    %53 = arith.mulf %48, %52 : vector<8x8x8xf32>
    %54 = arith.truncf %53 : vector<8x8x8xf32> to vector<8x8x8xbf16>
    %cst_10 = arith.constant dense<0.000000e+00> : vector<8x8x8xf32>
    %55 = tpu.matmul %54, %40, %cst_10 {dimension_numbers = #tpu.dot_dimension_numbers<[2], [1], [1], [2], [0, 0, 0, 1, 1, 2], [0], [0]>} : vector<8x8x8xbf16>, vector<8x8x8xbf16>, vector<8x8x8xf32> -> vector<8x8x8xf32>
    %56 = vector.shape_cast %55 : vector<8x8x8xf32> to vector<4x16x8xf32>
    %57 = arith.truncf %56 : vector<4x16x8xf32> to vector<4x16x8xbf16>
    %c0_11 = arith.constant 0 : index
    %c0_12 = arith.constant 0 : index
    %c0_13 = arith.constant 0 : index
    %58 = vector.load %arg4[%c0_11, %c0_12, %c0_13] : memref<4x8x32xbf16, #tpu.memory_space<vmem>>, vector<4x8x32xbf16>
    %cst_14 = arith.constant dense<0.000000e+00> : vector<4x16x32xf32>
    %59 = tpu.matmul %57, %58, %cst_14 {dimension_numbers = #tpu.dot_dimension_numbers<[2], [1], [1], [2], [0, 0, 0, 1, 1, 2], [0], [0]>} : vector<4x16x8xbf16>, vector<4x8x32xbf16>, vector<4x16x32xf32> -> vector<4x16x32xf32>
    %60 = vector.extract_strided_slice %59 {offsets = [0, 0, 0], sizes = [1, 16, 32], strides = [1, 1, 1]} : vector<4x16x32xf32> to vector<1x16x32xf32>
    %61 = vector.shape_cast %60 : vector<1x16x32xf32> to vector<16x32xf32>
    %62 = vector.extract_strided_slice %59 {offsets = [1, 0, 0], sizes = [1, 16, 32], strides = [1, 1, 1]} : vector<4x16x32xf32> to vector<1x16x32xf32>
    %63 = vector.shape_cast %62 : vector<1x16x32xf32> to vector<16x32xf32>
    %64 = arith.addf %61, %63 : vector<16x32xf32>
    %65 = vector.extract_strided_slice %59 {offsets = [2, 0, 0], sizes = [1, 16, 32], strides = [1, 1, 1]} : vector<4x16x32xf32> to vector<1x16x32xf32>
    %66 = vector.shape_cast %65 : vector<1x16x32xf32> to vector<16x32xf32>
    %67 = arith.addf %64, %66 : vector<16x32xf32>
    %68 = vector.extract_strided_slice %59 {offsets = [3, 0, 0], sizes = [1, 16, 32], strides = [1, 1, 1]} : vector<4x16x32xf32> to vector<1x16x32xf32>
    %69 = vector.shape_cast %68 : vector<1x16x32xf32> to vector<16x32xf32>
    %70 = arith.addf %67, %69 : vector<16x32xf32>
    %c0_15 = arith.constant 0 : index
    %c0_16 = arith.constant 0 : index
    %71 = vector.load %arg5[%c0_15, %c0_16] : memref<1x32xf32, #tpu.memory_space<vmem>>, vector<1x32xf32>
    %72 = vector.broadcast %71 : vector<1x32xf32> to vector<16x32xf32>
    %73 = arith.addf %70, %72 : vector<16x32xf32>
    %74 = arith.addf %1, %73 : vector<16x32xf32>
    %c0_17 = arith.constant 0 : index
    %c0_18 = arith.constant 0 : index
    %75 = vector.load %arg6[%c0_17, %c0_18] : memref<1x32xf32, #tpu.memory_space<vmem>>, vector<1x32xf32>
    %c0_19 = arith.constant 0 : index
    %c0_20 = arith.constant 0 : index
    %76 = vector.load %arg7[%c0_19, %c0_20] : memref<1x32xf32, #tpu.memory_space<vmem>>, vector<1x32xf32>
    %cst_21 = arith.constant dense<0.000000e+00> : vector<16xf32>
    %77 = vector.multi_reduction <add>, %74, %cst_21 [1] : vector<16x32xf32> to vector<16xf32>
    %78 = vector.shape_cast %77 : vector<16xf32> to vector<16x1xf32>
    %cst_22 = arith.constant 3.200000e+01 : f32
    %79 = vector.broadcast %cst_22 : f32 to vector<16x1xf32>
    %80 = arith.divf %78, %79 : vector<16x1xf32>
    %81 = vector.broadcast %80 : vector<16x1xf32> to vector<16x32xf32>
    %82 = arith.subf %74, %81 : vector<16x32xf32>
    %83 = arith.mulf %82, %82 : vector<16x32xf32>
    %cst_23 = arith.constant dense<0.000000e+00> : vector<16xf32>
    %84 = vector.multi_reduction <add>, %83, %cst_23 [1] : vector<16x32xf32> to vector<16xf32>
    %85 = vector.shape_cast %84 : vector<16xf32> to vector<16x1xf32>
    %cst_24 = arith.constant 3.200000e+01 : f32
    %86 = vector.broadcast %cst_24 : f32 to vector<16x1xf32>
    %87 = arith.divf %85, %86 : vector<16x1xf32>
    %cst_25 = arith.constant 9.99999974E-6 : f32
    %88 = vector.broadcast %cst_25 : f32 to vector<16x1xf32>
    %89 = arith.addf %87, %88 : vector<16x1xf32>
    %90 = math.rsqrt %89 : vector<16x1xf32>
    %91 = vector.broadcast %90 : vector<16x1xf32> to vector<16x32xf32>
    %92 = arith.mulf %82, %91 : vector<16x32xf32>
    %93 = vector.broadcast %75 : vector<1x32xf32> to vector<16x32xf32>
    %94 = arith.mulf %92, %93 : vector<16x32xf32>
    %95 = vector.broadcast %76 : vector<1x32xf32> to vector<16x32xf32>
    %96 = arith.addf %94, %95 : vector<16x32xf32>
    %97 = arith.truncf %96 : vector<16x32xf32> to vector<16x32xbf16>
    %c0_26 = arith.constant 0 : index
    %c0_27 = arith.constant 0 : index
    %98 = vector.load %arg8[%c0_26, %c0_27] : memref<64x32xbf16, #tpu.memory_space<vmem>>, vector<64x32xbf16>
    %cst_28 = arith.constant dense<0.000000e+00> : vector<16x64xf32>
    %99 = tpu.matmul %97, %98, %cst_28 {dimension_numbers = #tpu.dot_dimension_numbers<[1], [1], [0], [0], [0, 0, 1, 0], [], []>} : vector<16x32xbf16>, vector<64x32xbf16>, vector<16x64xf32> -> vector<16x64xf32>
    %c0_29 = arith.constant 0 : index
    %c0_30 = arith.constant 0 : index
    %100 = vector.load %arg9[%c0_29, %c0_30] : memref<1x64xf32, #tpu.memory_space<vmem>>, vector<1x64xf32>
    %101 = vector.broadcast %100 : vector<1x64xf32> to vector<16x64xf32>
    %102 = arith.addf %99, %101 : vector<16x64xf32>
    %cst_31 = arith.constant 5.000000e-01 : f32
    %103 = vector.broadcast %cst_31 : f32 to vector<16x64xf32>
    %104 = arith.mulf %103, %102 : vector<16x64xf32>
    %cst_32 = arith.constant 0.707106769 : f32
    %105 = vector.broadcast %cst_32 : f32 to vector<16x64xf32>
    %106 = arith.mulf %102, %105 : vector<16x64xf32>
    %cst_33 = arith.constant 0.000000e+00 : f32
    %107 = vector.broadcast %cst_33 : f32 to vector<16x64xf32>
    %108 = arith.cmpf oge, %106, %107 : vector<16x64xf32>
    %cst_34 = arith.constant 1.000000e+00 : f32
    %cst_35 = arith.constant -1.000000e+00 : f32
    %109 = vector.broadcast %cst_34 : f32 to vector<16x64xf32>
    %110 = vector.broadcast %cst_35 : f32 to vector<16x64xf32>
    %111 = arith.select %108, %109, %110 : vector<16x64xi1>, vector<16x64xf32>
    %112 = math.absf %106 : vector<16x64xf32>
    %cst_36 = arith.constant 0.327591091 : f32
    %113 = vector.broadcast %cst_36 : f32 to vector<16x64xf32>
    %114 = arith.mulf %113, %112 : vector<16x64xf32>
    %cst_37 = arith.constant 1.000000e+00 : f32
    %115 = vector.broadcast %cst_37 : f32 to vector<16x64xf32>
    %116 = arith.addf %115, %114 : vector<16x64xf32>
    %117 = tpu.reciprocal %116 {approx = true} : vector<16x64xf32> -> vector<16x64xf32>
    %cst_38 = arith.constant 1.06140542 : f32
    %118 = vector.broadcast %cst_38 : f32 to vector<16x64xf32>
    %119 = arith.mulf %118, %117 : vector<16x64xf32>
    %cst_39 = arith.constant -1.45315206 : f32
    %120 = vector.broadcast %cst_39 : f32 to vector<16x64xf32>
    %121 = arith.addf %119, %120 : vector<16x64xf32>
    %122 = arith.mulf %121, %117 : vector<16x64xf32>
    %cst_40 = arith.constant 1.42141378 : f32
    %123 = vector.broadcast %cst_40 : f32 to vector<16x64xf32>
    %124 = arith.addf %122, %123 : vector<16x64xf32>
    %125 = arith.mulf %124, %117 : vector<16x64xf32>
    %cst_41 = arith.constant -0.284496725 : f32
    %126 = vector.broadcast %cst_41 : f32 to vector<16x64xf32>
    %127 = arith.addf %125, %126 : vector<16x64xf32>
    %128 = arith.mulf %127, %117 : vector<16x64xf32>
    %cst_42 = arith.constant 0.254829586 : f32
    %129 = vector.broadcast %cst_42 : f32 to vector<16x64xf32>
    %130 = arith.addf %128, %129 : vector<16x64xf32>
    %131 = arith.mulf %130, %117 : vector<16x64xf32>
    %cst_43 = arith.constant 0.000000e+00 : f32
    %132 = vector.broadcast %cst_43 : f32 to vector<16x64xf32>
    %133 = arith.subf %132, %112 : vector<16x64xf32>
    %134 = arith.mulf %133, %112 : vector<16x64xf32>
    %135 = math.exp %134 : vector<16x64xf32>
    %136 = arith.mulf %131, %135 : vector<16x64xf32>
    %cst_44 = arith.constant 1.000000e+00 : f32
    %137 = vector.broadcast %cst_44 : f32 to vector<16x64xf32>
    %138 = arith.subf %137, %136 : vector<16x64xf32>
    %139 = arith.mulf %111, %138 : vector<16x64xf32>
    %cst_45 = arith.constant 1.000000e+00 : f32
    %140 = vector.broadcast %cst_45 : f32 to vector<16x64xf32>
    %141 = arith.addf %140, %139 : vector<16x64xf32>
    %142 = arith.mulf %104, %141 : vector<16x64xf32>
    %143 = arith.truncf %142 : vector<16x64xf32> to vector<16x64xbf16>
    %c0_46 = arith.constant 0 : index
    %c0_47 = arith.constant 0 : index
    %144 = vector.load %arg10[%c0_46, %c0_47] : memref<32x64xbf16, #tpu.memory_space<vmem>>, vector<32x64xbf16>
    %cst_48 = arith.constant dense<0.000000e+00> : vector<16x32xf32>
    %145 = tpu.matmul %143, %144, %cst_48 {dimension_numbers = #tpu.dot_dimension_numbers<[1], [1], [0], [0], [0, 0, 1, 0], [], []>} : vector<16x64xbf16>, vector<32x64xbf16>, vector<16x32xf32> -> vector<16x32xf32>
    %c0_49 = arith.constant 0 : index
    %c0_50 = arith.constant 0 : index
    %146 = vector.load %arg11[%c0_49, %c0_50] : memref<1x32xf32, #tpu.memory_space<vmem>>, vector<1x32xf32>
    %147 = vector.broadcast %146 : vector<1x32xf32> to vector<16x32xf32>
    %148 = arith.addf %145, %147 : vector<16x32xf32>
    %149 = arith.addf %148, %96 : vector<16x32xf32>
    %c0_51 = arith.constant 0 : index
    %c0_52 = arith.constant 0 : index
    %150 = vector.load %arg12[%c0_51, %c0_52] : memref<1x32xf32, #tpu.memory_space<vmem>>, vector<1x32xf32>
    %c0_53 = arith.constant 0 : index
    %c0_54 = arith.constant 0 : index
    %151 = vector.load %arg13[%c0_53, %c0_54] : memref<1x32xf32, #tpu.memory_space<vmem>>, vector<1x32xf32>
    %cst_55 = arith.constant dense<0.000000e+00> : vector<16xf32>
    %152 = vector.multi_reduction <add>, %149, %cst_55 [1] : vector<16x32xf32> to vector<16xf32>
    %153 = vector.shape_cast %152 : vector<16xf32> to vector<16x1xf32>
    %cst_56 = arith.constant 3.200000e+01 : f32
    %154 = vector.broadcast %cst_56 : f32 to vector<16x1xf32>
    %155 = arith.divf %153, %154 : vector<16x1xf32>
    %156 = vector.broadcast %155 : vector<16x1xf32> to vector<16x32xf32>
    %157 = arith.subf %149, %156 : vector<16x32xf32>
    %158 = arith.mulf %157, %157 : vector<16x32xf32>
    %cst_57 = arith.constant dense<0.000000e+00> : vector<16xf32>
    %159 = vector.multi_reduction <add>, %158, %cst_57 [1] : vector<16x32xf32> to vector<16xf32>
    %160 = vector.shape_cast %159 : vector<16xf32> to vector<16x1xf32>
    %cst_58 = arith.constant 3.200000e+01 : f32
    %161 = vector.broadcast %cst_58 : f32 to vector<16x1xf32>
    %162 = arith.divf %160, %161 : vector<16x1xf32>
    %cst_59 = arith.constant 9.99999974E-6 : f32
    %163 = vector.broadcast %cst_59 : f32 to vector<16x1xf32>
    %164 = arith.addf %162, %163 : vector<16x1xf32>
    %165 = math.rsqrt %164 : vector<16x1xf32>
    %166 = vector.broadcast %165 : vector<16x1xf32> to vector<16x32xf32>
    %167 = arith.mulf %157, %166 : vector<16x32xf32>
    %168 = vector.broadcast %150 : vector<1x32xf32> to vector<16x32xf32>
    %169 = arith.mulf %167, %168 : vector<16x32xf32>
    %170 = vector.broadcast %151 : vector<1x32xf32> to vector<16x32xf32>
    %171 = arith.addf %169, %170 : vector<16x32xf32>
    %172 = vector.shape_cast %171 : vector<16x32xf32> to vector<2x8x32xf32>
    %c0_60 = arith.constant 0 : index
    %c0_61 = arith.constant 0 : index
    %c0_62 = arith.constant 0 : index
    %173 = vector.load %arg14[%c0_60, %c0_61, %c0_62] : memref<2x8x32xf32, #tpu.memory_space<vmem>>, vector<2x8x32xf32>
    tpu.vector_store %arg14[%c0_60, %c0_61, %c0_62], %172 {strides = array<i32>} : memref<2x8x32xf32, #tpu.memory_space<vmem>>, vector<2x8x32xf32>,
    return
  }
  func.func @transform_0(%arg0: i32) -> (i32, i32, i32) {
    %c0_i32 = arith.constant 0 : i32
    %c0_i32_0 = arith.constant 0 : i32
    %c0_i32_1 = arith.constant 0 : i32
    return %arg0, %c0_i32, %c0_i32_0 : i32, i32, i32
  }
  func.func @transform_1(%arg0: i32) -> (i32, i32) {
    %c0_i32 = arith.constant 0 : i32
    %c0_i32_0 = arith.constant 0 : i32
    %c0_i32_1 = arith.constant 0 : i32
    return %c0_i32, %c0_i32_0 : i32, i32
  }
  func.func @transform_2(%arg0: i32) -> (i32, i32) {
    %c0_i32 = arith.constant 0 : i32
    %c0_i32_0 = arith.constant 0 : i32
    %c0_i32_1 = arith.constant 0 : i32
    return %c0_i32, %c0_i32_0 : i32, i32
  }
  func.func @transform_3(%arg0: i32) -> (i32, i32, i32) {
    %c0_i32 = arith.constant 0 : i32
    %c0_i32_0 = arith.constant 0 : i32
    %c0_i32_1 = arith.constant 0 : i32
    %c0_i32_2 = arith.constant 0 : i32
    return %c0_i32, %c0_i32_0, %c0_i32_1 : i32, i32, i32
  }
  func.func @transform_4(%arg0: i32) -> (i32, i32) {
    %c0_i32 = arith.constant 0 : i32
    %c0_i32_0 = arith.constant 0 : i32
    %c0_i32_1 = arith.constant 0 : i32
    return %c0_i32, %c0_i32_0 : i32, i32
  }
  func.func @transform_5(%arg0: i32) -> (i32, i32) {
    %c0_i32 = arith.constant 0 : i32
    %c0_i32_0 = arith.constant 0 : i32
    %c0_i32_1 = arith.constant 0 : i32
    return %c0_i32, %c0_i32_0 : i32, i32
  }
  func.func @transform_6(%arg0: i32) -> (i32, i32) {
    %c0_i32 = arith.constant 0 : i32
    %c0_i32_0 = arith.constant 0 : i32
    %c0_i32_1 = arith.constant 0 : i32
    return %c0_i32, %c0_i32_0 : i32, i32
  }
  func.func @transform_7(%arg0: i32) -> (i32, i32) {
    %c0_i32 = arith.constant 0 : i32
    %c0_i32_0 = arith.constant 0 : i32
    %c0_i32_1 = arith.constant 0 : i32
    return %c0_i32, %c0_i32_0 : i32, i32
  }
  func.func @transform_8(%arg0: i32) -> (i32, i32) {
    %c0_i32 = arith.constant 0 : i32
    %c0_i32_0 = arith.constant 0 : i32
    %c0_i32_1 = arith.constant 0 : i32
    return %c0_i32, %c0_i32_0 : i32, i32
  }
  func.func @transform_9(%arg0: i32) -> (i32, i32) {
    %c0_i32 = arith.constant 0 : i32
    %c0_i32_0 = arith.constant 0 : i32
    %c0_i32_1 = arith.constant 0 : i32
    return %c0_i32, %c0_i32_0 : i32, i32
  }
  func.func @transform_10(%arg0: i32) -> (i32, i32) {
    %c0_i32 = arith.constant 0 : i32
    %c0_i32_0 = arith.constant 0 : i32
    %c0_i32_1 = arith.constant 0 : i32
    return %c0_i32, %c0_i32_0 : i32, i32
  }
  func.func @transform_11(%arg0: i32) -> (i32, i32) {
    %c0_i32 = arith.constant 0 : i32
    %c0_i32_0 = arith.constant 0 : i32
    %c0_i32_1 = arith.constant 0 : i32
    return %c0_i32, %c0_i32_0 : i32, i32
  }
  func.func @transform_12(%arg0: i32) -> (i32, i32) {
    %c0_i32 = arith.constant 0 : i32
    %c0_i32_0 = arith.constant 0 : i32
    %c0_i32_1 = arith.constant 0 : i32
    return %c0_i32, %c0_i32_0 : i32, i32
  }
  func.func @transform_13(%arg0: i32) -> (i32, i32, i32) {
    %c0_i32 = arith.constant 0 : i32
    %c0_i32_0 = arith.constant 0 : i32
    %c0_i32_1 = arith.constant 0 : i32
    return %arg0, %c0_i32, %c0_i32_0 : i32, i32, i32
  }
}

</mosaic_0001>

<llo_original>
// kernel: tpu_custom_call.1
$region0: #{tpu_custom_call.1}
  #allocation0 [shape = 'u32[]', space=smem, size = 0x4, offset = 0x4, fixed_abs, tag = 'smem constant byte address 0x4 - core index']
  #allocation1 [shape = 'u32[144,128]{1,0:T(1,128)}', space=vmem, size = 0x12000, scoped, tag = 'internal scratch']
  %s0 = inlined_call_operand.vmem [shape: f32[2,8,32], index: 0, kind: input, shape index: {}]
  %s1 = inlined_call_operand.vmem [shape: bf16[96,32], index: 1, kind: input, shape index: {}]
  %s2 = inlined_call_operand.vmem [shape: f32[1,96], index: 2, kind: input, shape index: {}]
  %s3 = inlined_call_operand.vmem [shape: bf16[4,8,32], index: 3, kind: input, shape index: {}]
  %s4 = inlined_call_operand.vmem [shape: f32[1,32], index: 4, kind: input, shape index: {}]
  %s5 = inlined_call_operand.vmem [shape: f32[1,32], index: 5, kind: input, shape index: {}]
  %s6 = inlined_call_operand.vmem [shape: f32[1,32], index: 6, kind: input, shape index: {}]
  %s7 = inlined_call_operand.vmem [shape: bf16[64,32], index: 7, kind: input, shape index: {}]
  %s8 = inlined_call_operand.vmem [shape: f32[1,64], index: 8, kind: input, shape index: {}]
  %s9 = inlined_call_operand.vmem [shape: bf16[32,64], index: 9, kind: input, shape index: {}]
  %s10 = inlined_call_operand.vmem [shape: f32[1,32], index: 10, kind: input, shape index: {}]
  %s11 = inlined_call_operand.vmem [shape: f32[1,32], index: 11, kind: input, shape index: {}]
  %s12 = inlined_call_operand.vmem [shape: f32[1,32], index: 12, kind: input, shape index: {}]
  %s13 = inlined_call_operand.hbm [shape: f32[2,8,32], index: 13, kind: output, shape index: {}]
  %s14 = sld [smem:[#allocation0]]
  $region62: #{tpu_custom_call.1} parent=0
    _
  %s16 = ssub.s32 1, %s14
  %s17 = scalar_select 0, %s16, %s14
  $region1: #{tpu_custom_call.1} parent=0
    #allocation2 [shape = 'u8[8192]{0}', space=vmem, size = 0x2000, scoped, tag = 'output window, operand 0, single buffered']
    #allocation3 [shape = 's32[1]{0}', space=sflag, size = 0x4, scoped, tag = 'scoped memory for tpu_custom_call.1']
    %18 = vsyncpa [#allocation3], 0
    // Predicated region
    $region2: #{tpu_custom_call.1} parent=1 // pred_check
      _
    $region3: #{tpu_custom_call.1} parent=1 // pred_check_branch
      %20 = sbr.rel (0) target = $region5
    $region4: #{tpu_custom_call.1} parent=1 // pred_region
      _
    $region5: #{tpu_custom_call.1} parent=1 // pred_fallthru
      _
    // Predicated region
    $region6: #{tpu_custom_call.1} parent=1 // pred_check
      _
    $region7: #{tpu_custom_call.1} parent=1 // pred_check_branch
      %22 = sbr.rel (0) target = $region9
    $region8: #{tpu_custom_call.1} parent=1 // pred_region
      _
    $region9: #{tpu_custom_call.1} parent=1 // pred_fallthru
      _
    // Predicated region
    $region10: #{tpu_custom_call.1} parent=1 // pred_check
      _
    $region11: #{tpu_custom_call.1} parent=1 // pred_check_branch
      %24 = sbr.rel (0) target = $region13
    $region12: #{tpu_custom_call.1} parent=1 // pred_region
      _
    $region13: #{tpu_custom_call.1} parent=1 // pred_fallthru
      _
    // Predicated region
    $region14: #{tpu_custom_call.1} parent=1 // pred_check
      _
    $region15: #{tpu_custom_call.1} parent=1 // pred_check_branch
      %26 = sbr.rel (0) target = $region17
    $region16: #{tpu_custom_call.1} parent=1 // pred_region
      _
    $region17: #{tpu_custom_call.1} parent=1 // pred_fallthru
      _
    // Predicated region
    $region18: #{tpu_custom_call.1} parent=1 // pred_check
      _
    $region19: #{tpu_custom_call.1} parent=1 // pred_check_branch
      %28 = sbr.rel (0) target = $region21
    $region20: #{tpu_custom_call.1} parent=1 // pred_region
      _
    $region21: #{tpu_custom_call.1} parent=1 // pred_fallthru
      _
    // Predicated region
    $region22: #{tpu_custom_call.1} parent=1 // pred_check
      _
    $region23: #{tpu_custom_call.1} parent=1 // pred_check_branch
      %30 = sbr.rel (0) target = $region25
    $region24: #{tpu_custom_call.1} parent=1 // pred_region
      _
    $region25: #{tpu_custom_call.1} parent=1 // pred_fallthru
      _
    // Predicated region
    $region26: #{tpu_custom_call.1} parent=1 // pred_check
      _
    $region27: #{tpu_custom_call.1} parent=1 // pred_check_branch
      %32 = sbr.rel (0) target = $region29
    $region28: #{tpu_custom_call.1} parent=1 // pred_region
      _
    $region29: #{tpu_custom_call.1} parent=1 // pred_fallthru
      _
    // Predicated region
    $region30: #{tpu_custom_call.1} parent=1 // pred_check
      _
    $region31: #{tpu_custom_call.1} parent=1 // pred_check_branch
      %34 = sbr.rel (0) target = $region33
    $region32: #{tpu_custom_call.1} parent=1 // pred_region
      _
    $region33: #{tpu_custom_call.1} parent=1 // pred_fallthru
      _
    // Predicated region
    $region34: #{tpu_custom_call.1} parent=1 // pred_check
      _
    $region35: #{tpu_custom_call.1} parent=1 // pred_check_branch
      %36 = sbr.rel (0) target = $region37
    $region36: #{tpu_custom_call.1} parent=1 // pred_region
      _
    $region37: #{tpu_custom_call.1} parent=1 // pred_fallthru
      _
    // Predicated region
    $region38: #{tpu_custom_call.1} parent=1 // pred_check
      _
    $region39: #{tpu_custom_call.1} parent=1 // pred_check_branch
      %38 = sbr.rel (0) target = $region41
    $region40: #{tpu_custom_call.1} parent=1 // pred_region
      _
    $region41: #{tpu_custom_call.1} parent=1 // pred_fallthru
      _
    // Predicated region
    $region42: #{tpu_custom_call.1} parent=1 // pred_check
      _
    $region43: #{tpu_custom_call.1} parent=1 // pred_check_branch
      %40 = sbr.rel (0) target = $region45
    $region44: #{tpu_custom_call.1} parent=1 // pred_region
      _
    $region45: #{tpu_custom_call.1} parent=1 // pred_fallthru
      _
    // Predicated region
    $region46: #{tpu_custom_call.1} parent=1 // pred_check
      _
    $region47: #{tpu_custom_call.1} parent=1 // pred_check_branch
      %42 = sbr.rel (0) target = $region49
    $region48: #{tpu_custom_call.1} parent=1 // pred_region
      _
    $region49: #{tpu_custom_call.1} parent=1 // pred_fallthru
      _
    // Predicated region
    $region50: #{tpu_custom_call.1} parent=1 // pred_check
      _
    $region51: #{tpu_custom_call.1} parent=1 // pred_check_branch
      %44 = sbr.rel (0) target = $region53
    $region52: #{tpu_custom_call.1} parent=1 // pred_region
      _
    $region53: #{tpu_custom_call.1} parent=1 // pred_fallthru
      _
    %v46 = vld [vmem:[%s0] sm:$0xff]
    %v47 = vld [vmem:[%s0 + $0x8] sm:$0xff]
    %v48 = vpack.c.bf16 %v47, %v46
    %v49 = vld [vmem:[%s1] sm:$0xf]
    %v50 = vld [vmem:[%s1 + $0x4] sm:$0xf]
    %v51 = vld [vmem:[%s1 + $0x8] sm:$0xf]
    %v52 = vld [vmem:[%s1 + $0xc] sm:$0xf]
    %v53 = vld [vmem:[%s1 + $0x10] sm:$0xf]
    %v54 = vld [vmem:[%s1 + $0x14] sm:$0xf]
    %v55 = vld [vmem:[%s1 + $0x18] sm:$0xf]
    %v56 = vld [vmem:[%s1 + $0x1c] sm:$0xf]
    %v57 = vld [vmem:[%s1 + $0x20] sm:$0xf]
    %v58 = vld [vmem:[%s1 + $0x24] sm:$0xf]
    %v59 = vld [vmem:[%s1 + $0x28] sm:$0xf]
    %v60 = vld [vmem:[%s1 + $0x2c] sm:$0xf]
    %v61 = vld [vmem:[%s2] sm:$0x1]
    %v63 = vlaneseq
    %v64 = vshrl.u32 %v63, 7
    %v65 = vsub.s32 0, %v64
    %v66 = vrot.slane %v61, %v65
    %v80 = vunpack.c.l.b16 %v49
    %v81 = vunpack.c.l.b16 %v50
    %v82 = vunpack.c.l.b16 %v51
    %v83 = vunpack.c.l.b16 %v52
    %v84 = vunpack.c.l.b16 %v53
    %v85 = vunpack.c.l.b16 %v54
    %v86 = vunpack.c.l.b16 %v55
    %v87 = vunpack.c.l.b16 %v56
    %v88 = vunpack.c.l.b16 %v57
    %v89 = vunpack.c.l.b16 %v58
    %v90 = vunpack.c.l.b16 %v59
    %v91 = vunpack.c.l.b16 %v60
    %v92 = vpack.c.b16 %v81, %v80
    %v93 = vpack.c.b16 %v83, %v82
    %v94 = vpack.c.b16 %v85, %v84
    %v95 = vpack.c.b16 %v87, %v86
    %v96 = vpack.c.b16 %v89, %v88
    %v97 = vpack.c.b16 %v91, %v90
    %vm98 = vcmask 261120
    %v100 = vsel %vm98, %v48, 0
    %v103 = vsel %vm98, %v92, 0
    %v106 = vsel %vm98, %v93, 0
    %v109 = vsel %vm98, %v94, 0
    %v112 = vsel %vm98, %v95, 0
    %v115 = vsel %vm98, %v96, 0
    %v118 = vsel %vm98, %v97, 0
    %120 = vmatprep.subr.bf16.mxu0 0
    %121 = vmatpush1.bf16.xpose.msra.mxu0 %v103
    %122 = vmatprep.subr.bf16.mxu0 0
    %123 = vmatpush1.bf16.xpose.msra.mxu0 %v106
    %124 = vmatprep.subr.bf16.mxu0 0
    %125 = vmatpush1.bf16.xpose.msra.mxu0 %v109
    %126 = vmatprep.subr.bf16.mxu0 0
    %127 = vmatpush1.bf16.xpose.msra.mxu0 %v112
    %128 = vmatprep.subr.bf16.mxu0 0
    %129 = vmatpush1.bf16.xpose.msra.mxu0 %v115
    %130 = vmatprep.subr.bf16.mxu0 0
    %131 = vmatpush1.bf16.xpose.msra.mxu0 %v118
    %132 = vmatprep.subr.bf16.mxu0 0
    %133 = vmatpush1.bf16.xpose.msra.mxu0 0
    %134 = vmatprep.subr.bf16.mxu0 0
    %135 = vmatpush1.bf16.xpose.msra.mxu0 0
    %136 = vmatprep.subr.bf16.mxu0 0
    %137 = vmatpush1.bf16.xpose.msra.mxu0 0
    %138 = vmatprep.subr.bf16.mxu0 0
    %139 = vmatpush1.bf16.xpose.msra.mxu0 0
    %140 = vmatprep.subr.bf16.mxu0 0
    %141 = vmatpush1.bf16.xpose.msra.mxu0 0
    %142 = vmatprep.subr.bf16.mxu0 0
    %143 = vmatpush1.bf16.xpose.msra.mxu0 0
    %144 = vmatprep.subr.bf16.mxu0 0
    %145 = vmatpush1.bf16.xpose.msra.mxu0 0
    %146 = vmatprep.subr.bf16.mxu0 0
    %147 = vmatpush1.bf16.xpose.msra.mxu0 0
    %148 = vmatprep.subr.bf16.mxu0 0
    %149 = vmatpush1.bf16.xpose.msra.mxu0 0
    %150 = vmatprep.subr.bf16.mxu0 0
    %151 = vmatpush1.bf16.xpose.msra.mxu0 0
    %152 = vmatprep.mubr.bf16.mxu0 0
    %153 = vmatmul.mubr.bf16.gmra.mrb[0].mxu0 %v100
    %v154 = vpop.f32.mrb[0].mxu0
    %v155 = vadd.f32 %v66, %v154
    %v156 = vpop.f32.mrb[0].mxu0
    %v157 = vpop.f32.mrb[0].mxu0
    %v158 = vadd.f32 %v66, %v157
    %v159 = vpop.f32.mrb[0].mxu0
    %160 = vdwg.mxu0
    %163 = vrot.lane.b32.xlu0 %v155, 120
    %v164 = vpop.permute.xlu0 %163
    %165 = vrot.lane.b32.xlu0 %v158, 120
    %v166 = vpop.permute.xlu0 %165
    %169 = vrot.lane.b32.xlu0 %v155, 112
    %v170 = vpop.permute.xlu0 %169
    %171 = vrot.lane.b32.xlu0 %v158, 112
    %v172 = vpop.permute.xlu0 %171
    %175 = vrot.lane.b32.xlu0 %v155, 104
    %v176 = vpop.permute.xlu0 %175
    %177 = vrot.lane.b32.xlu0 %v158, 104
    %v178 = vpop.permute.xlu0 %177
    %v181 = vpack.c.bf16 %v155, %v155
    %v182 = vpack.c.bf16 %v158, %v158
    %v183 = vpack.c.bf16 %v164, %v164
    %v184 = vpack.c.bf16 %v166, %v166
    %v185 = vpack.c.bf16 %v170, %v170
    %v186 = vpack.c.bf16 %v172, %v172
    %v187 = vpack.c.bf16 %v176, %v176
    %v188 = vpack.c.bf16 %v178, %v178
    %190 = vrot.lane.b32.xlu0 %v181, 96
    %v191 = vpop.permute.xlu0 %190
    %vm192 = vcmask 64512
    %v194 = vsel %vm192, %v181, 0
    %v197 = vsel %vm192, %v191, 0
    %199 = vmatprep.subr.bf16.mxu0 0
    %200 = vmatpush1.bf16.xpose.msra.mxu0 %v197
    %201 = vmatprep.subr.bf16.mxu0 0
    %202 = vmatpush1.bf16.xpose.msra.mxu0 0
    %203 = vmatprep.subr.bf16.mxu0 0
    %204 = vmatpush1.bf16.xpose.msra.mxu0 0
    %205 = vmatprep.subr.bf16.mxu0 0
    %206 = vmatpush1.bf16.xpose.msra.mxu0 0
    %207 = vmatprep.subr.bf16.mxu0 0
    %208 = vmatpush1.bf16.xpose.msra.mxu0 0
    %209 = vmatprep.subr.bf16.mxu0 0
    %210 = vmatpush1.bf16.xpose.msra.mxu0 0
    %211 = vmatprep.subr.bf16.mxu0 0
    %212 = vmatpush1.bf16.xpose.msra.mxu0 0
    %213 = vmatprep.subr.bf16.mxu0 0
    %214 = vmatpush1.bf16.xpose.msra.mxu0 0
    %215 = vmatprep.subr.bf16.mxu0 0
    %216 = vmatpush1.bf16.xpose.msra.mxu0 0
    %217 = vmatprep.subr.bf16.mxu0 0
    %218 = vmatpush1.bf16.xpose.msra.mxu0 0
    %219 = vmatprep.subr.bf16.mxu0 0
    %220 = vmatpush1.bf16.xpose.msra.mxu0 0
    %221 = vmatprep.subr.bf16.mxu0 0
    %222 = vmatpush1.bf16.xpose.msra.mxu0 0
    %223 = vmatprep.subr.bf16.mxu0 0
    %224 = vmatpush1.bf16.xpose.msra.mxu0 0
    %225 = vmatprep.subr.bf16.mxu0 0
    %226 = vmatpush1.bf16.xpose.msra.mxu0 0
    %227 = vmatprep.subr.bf16.mxu0 0
    %228 = vmatpush1.bf16.xpose.msra.mxu0 0
    %229 = vmatprep.subr.bf16.mxu0 0
    %230 = vmatpush1.bf16.xpose.msra.mxu0 0
    %231 = vmatprep.mubr.bf16.mxu0 0
    %232 = vmatmul.mubr.bf16.gmra.mrb[0].mxu0 %v194
    %v233 = vpop.f32.mrb[0].mxu0
    %v234 = vadd.f32 0.0, %v233
    %v235 = vpop.f32.mrb[0].mxu0
    %v236 = vpop.f32.mrb[0].mxu0
    %v237 = vpop.f32.mrb[0].mxu0
    %238 = vdwg.mxu0
    %240 = vrot.lane.b32.xlu0 %v182, 96
    %v241 = vpop.permute.xlu0 %240
    %v243 = vsel %vm192, %v182, 0
    %v246 = vsel %vm192, %v241, 0
    %248 = vmatprep.subr.bf16.mxu0 0
    %249 = vmatpush1.bf16.xpose.msra.mxu0 %v246
    %250 = vmatprep.subr.bf16.mxu0 0
    %251 = vmatpush1.bf16.xpose.msra.mxu0 0
    %252 = vmatprep.subr.bf16.mxu0 0
    %253 = vmatpush1.bf16.xpose.msra.mxu0 0
    %254 = vmatprep.subr.bf16.mxu0 0
    %255 = vmatpush1.bf16.xpose.msra.mxu0 0
    %256 = vmatprep.subr.bf16.mxu0 0
    %257 = vmatpush1.bf16.xpose.msra.mxu0 0
    %258 = vmatprep.subr.bf16.mxu0 0
    %259 = vmatpush1.bf16.xpose.msra.mxu0 0
    %260 = vmatprep.subr.bf16.mxu0 0
    %261 = vmatpush1.bf16.xpose.msra.mxu0 0
    %262 = vmatprep.subr.bf16.mxu0 0
    %263 = vmatpush1.bf16.xpose.msra.mxu0 0
    %264 = vmatprep.subr.bf16.mxu0 0
    %265 = vmatpush1.bf16.xpose.msra.mxu0 0
    %266 = vmatprep.subr.bf16.mxu0 0
    %267 = vmatpush1.bf16.xpose.msra.mxu0 0
    %268 = vmatprep.subr.bf16.mxu0 0
    %269 = vmatpush1.bf16.xpose.msra.mxu0 0
    %270 = vmatprep.subr.bf16.mxu0 0
    %271 = vmatpush1.bf16.xpose.msra.mxu0 0
    %272 = vmatprep.subr.bf16.mxu0 0
    %273 = vmatpush1.bf16.xpose.msra.mxu0 0
    %274 = vmatprep.subr.bf16.mxu0 0
    %275 = vmatpush1.bf16.xpose.msra.mxu0 0
    %276 = vmatprep.subr.bf16.mxu0 0
    %277 = vmatpush1.bf16.xpose.msra.mxu0 0
    %278 = vmatprep.subr.bf16.mxu0 0
    %279 = vmatpush1.bf16.xpose.msra.mxu0 0
    %280 = vmatprep.mubr.bf16.mxu0 0
    %281 = vmatmul.mubr.bf16.gmra.mrb[0].mxu0 %v243
    %v282 = vpop.f32.mrb[0].mxu0
    %v283 = vadd.f32 0.0, %v282
    %v284 = vpop.f32.mrb[0].mxu0
    %v285 = vpop.f32.mrb[0].mxu0
    %v286 = vpop.f32.mrb[0].mxu0
    %287 = vdwg.mxu0
    %289 = vrot.lane.b32.xlu0 %v183, 96
    %v290 = vpop.permute.xlu0 %289
    %v292 = vsel %vm192, %v183, 0
    %v295 = vsel %vm192, %v290, 0
    %297 = vmatprep.subr.bf16.mxu0 0
    %298 = vmatpush1.bf16.xpose.msra.mxu0 %v295
    %299 = vmatprep.subr.bf16.mxu0 0
    %300 = vmatpush1.bf16.xpose.msra.mxu0 0
    %301 = vmatprep.subr.bf16.mxu0 0
    %302 = vmatpush1.bf16.xpose.msra.mxu0 0
    %303 = vmatprep.subr.bf16.mxu0 0
    %304 = vmatpush1.bf16.xpose.msra.mxu0 0
    %305 = vmatprep.subr.bf16.mxu0 0
    %306 = vmatpush1.bf16.xpose.msra.mxu0 0
    %307 = vmatprep.subr.bf16.mxu0 0
    %308 = vmatpush1.bf16.xpose.msra.mxu0 0
    %309 = vmatprep.subr.bf16.mxu0 0
    %310 = vmatpush1.bf16.xpose.msra.mxu0 0
    %311 = vmatprep.subr.bf16.mxu0 0
    %312 = vmatpush1.bf16.xpose.msra.mxu0 0
    %313 = vmatprep.subr.bf16.mxu0 0
    %314 = vmatpush1.bf16.xpose.msra.mxu0 0
    %315 = vmatprep.subr.bf16.mxu0 0
    %316 = vmatpush1.bf16.xpose.msra.mxu0 0
    %317 = vmatprep.subr.bf16.mxu0 0
    %318 = vmatpush1.bf16.xpose.msra.mxu0 0
    %319 = vmatprep.subr.bf16.mxu0 0
    %320 = vmatpush1.bf16.xpose.msra.mxu0 0
    %321 = vmatprep.subr.bf16.mxu0 0
    %322 = vmatpush1.bf16.xpose.msra.mxu0 0
    %323 = vmatprep.subr.bf16.mxu0 0
    %324 = vmatpush1.bf16.xpose.msra.mxu0 0
    %325 = vmatprep.subr.bf16.mxu0 0
    %326 = vmatpush1.bf16.xpose.msra.mxu0 0
    %327 = vmatprep.subr.bf16.mxu0 0
    %328 = vmatpush1.bf16.xpose.msra.mxu0 0
    %329 = vmatprep.mubr.bf16.mxu0 0
    %330 = vmatmul.mubr.bf16.gmra.mrb[0].mxu0 %v292
    %v331 = vpop.f32.mrb[0].mxu0
    %v332 = vadd.f32 0.0, %v331
    %v333 = vpop.f32.mrb[0].mxu0
    %v334 = vpop.f32.mrb[0].mxu0
    %v335 = vpop.f32.mrb[0].mxu0
    %336 = vdwg.mxu0
    %338 = vrot.lane.b32.xlu0 %v184, 96
    %v339 = vpop.permute.xlu0 %338
    %v341 = vsel %vm192, %v184, 0
    %v344 = vsel %vm192, %v339, 0
    %346 = vmatprep.subr.bf16.mxu0 0
    %347 = vmatpush1.bf16.xpose.msra.mxu0 %v344
    %348 = vmatprep.subr.bf16.mxu0 0
    %349 = vmatpush1.bf16.xpose.msra.mxu0 0
    %350 = vmatprep.subr.bf16.mxu0 0
    %351 = vmatpush1.bf16.xpose.msra.mxu0 0
    %352 = vmatprep.subr.bf16.mxu0 0
    %353 = vmatpush1.bf16.xpose.msra.mxu0 0
    %354 = vmatprep.subr.bf16.mxu0 0
    %355 = vmatpush1.bf16.xpose.msra.mxu0 0
    %356 = vmatprep.subr.bf16.mxu0 0
    %357 = vmatpush1.bf16.xpose.msra.mxu0 0
    %358 = vmatprep.subr.bf16.mxu0 0
    %359 = vmatpush1.bf16.xpose.msra.mxu0 0
    %360 = vmatprep.subr.bf16.mxu0 0
    %361 = vmatpush1.bf16.xpose.msra.mxu0 0
    %362 = vmatprep.subr.bf16.mxu0 0
    %363 = vmatpush1.bf16.xpose.msra.mxu0 0
    %364 = vmatprep.subr.bf16.mxu0 0
    %365 = vmatpush1.bf16.xpose.msra.mxu0 0
    %366 = vmatprep.subr.bf16.mxu0 0
    %367 = vmatpush1.bf16.xpose.msra.mxu0 0
    %368 = vmatprep.subr.bf16.mxu0 0
    %369 = vmatpush1.bf16.xpose.msra.mxu0 0
    %370 = vmatprep.subr.bf16.mxu0 0
    %371 = vmatpush1.bf16.xpose.msra.mxu0 0
    %372 = vmatprep.subr.bf16.mxu0 0
    %373 = vmatpush1.bf16.xpose.msra.mxu0 0
    %374 = vmatprep.subr.bf16.mxu0 0
    %375 = vmatpush1.bf16.xpose.msra.mxu0 0
    %376 = vmatprep.subr.bf16.mxu0 0
    %377 = vmatpush1.bf16.xpose.msra.mxu0 0
    %378 = vmatprep.mubr.bf16.mxu0 0
    %379 = vmatmul.mubr.bf16.gmra.mrb[0].mxu0 %v341
    %v380 = vpop.f32.mrb[0].mxu0
    %v381 = vadd.f32 0.0, %v380
    %v382 = vpop.f32.mrb[0].mxu0
    %v383 = vpop.f32.mrb[0].mxu0
    %v384 = vpop.f32.mrb[0].mxu0
    %385 = vdwg.mxu0
    %387 = vrot.lane.b32.xlu0 %v185, 96
    %v388 = vpop.permute.xlu0 %387
    %v390 = vsel %vm192, %v185, 0
    %v393 = vsel %vm192, %v388, 0
    %395 = vmatprep.subr.bf16.mxu0 0
    %396 = vmatpush1.bf16.xpose.msra.mxu0 %v393
    %397 = vmatprep.subr.bf16.mxu0 0
    %398 = vmatpush1.bf16.xpose.msra.mxu0 0
    %399 = vmatprep.subr.bf16.mxu0 0
    %400 = vmatpush1.bf16.xpose.msra.mxu0 0
    %401 = vmatprep.subr.bf16.mxu0 0
    %402 = vmatpush1.bf16.xpose.msra.mxu0 0
    %403 = vmatprep.subr.bf16.mxu0 0
    %404 = vmatpush1.bf16.xpose.msra.mxu0 0
    %405 = vmatprep.subr.bf16.mxu0 0
    %406 = vmatpush1.bf16.xpose.msra.mxu0 0
    %407 = vmatprep.subr.bf16.mxu0 0
    %408 = vmatpush1.bf16.xpose.msra.mxu0 0
    %409 = vmatprep.subr.bf16.mxu0 0
    %410 = vmatpush1.bf16.xpose.msra.mxu0 0
    %411 = vmatprep.subr.bf16.mxu0 0
    %412 = vmatpush1.bf16.xpose.msra.mxu0 0
    %413 = vmatprep.subr.bf16.mxu0 0
    %414 = vmatpush1.bf16.xpose.msra.mxu0 0
    %415 = vmatprep.subr.bf16.mxu0 0
    %416 = vmatpush1.bf16.xpose.msra.mxu0 0
    %417 = vmatprep.subr.bf16.mxu0 0
    %418 = vmatpush1.bf16.xpose.msra.mxu0 0
    %419 = vmatprep.subr.bf16.mxu0 0
    %420 = vmatpush1.bf16.xpose.msra.mxu0 0
    %421 = vmatprep.subr.bf16.mxu0 0
    %422 = vmatpush1.bf16.xpose.msra.mxu0 0
    %423 = vmatprep.subr.bf16.mxu0 0
    %424 = vmatpush1.bf16.xpose.msra.mxu0 0
    %425 = vmatprep.subr.bf16.mxu0 0
    %426 = vmatpush1.bf16.xpose.msra.mxu0 0
    %427 = vmatprep.mubr.bf16.mxu0 0
    %428 = vmatmul.mubr.bf16.gmra.mrb[0].mxu0 %v390
    %v429 = vpop.f32.mrb[0].mxu0
    %v430 = vadd.f32 0.0, %v429
    %v431 = vpop.f32.mrb[0].mxu0
    %v432 = vpop.f32.mrb[0].mxu0
    %v433 = vpop.f32.mrb[0].mxu0
    %434 = vdwg.mxu0
    %436 = vrot.lane.b32.xlu0 %v186, 96
    %v437 = vpop.permute.xlu0 %436
    %v439 = vsel %vm192, %v186, 0
    %v442 = vsel %vm192, %v437, 0
    %444 = vmatprep.subr.bf16.mxu0 0
    %445 = vmatpush1.bf16.xpose.msra.mxu0 %v442
    %446 = vmatprep.subr.bf16.mxu0 0
    %447 = vmatpush1.bf16.xpose.msra.mxu0 0
    %448 = vmatprep.subr.bf16.mxu0 0
    %449 = vmatpush1.bf16.xpose.msra.mxu0 0
    %450 = vmatprep.subr.bf16.mxu0 0
    %451 = vmatpush1.bf16.xpose.msra.mxu0 0
    %452 = vmatprep.subr.bf16.mxu0 0
    %453 = vmatpush1.bf16.xpose.msra.mxu0 0
    %454 = vmatprep.subr.bf16.mxu0 0
    %455 = vmatpush1.bf16.xpose.msra.mxu0 0
    %456 = vmatprep.subr.bf16.mxu0 0
    %457 = vmatpush1.bf16.xpose.msra.mxu0 0
    %458 = vmatprep.subr.bf16.mxu0 0
    %459 = vmatpush1.bf16.xpose.msra.mxu0 0
    %460 = vmatprep.subr.bf16.mxu0 0
    %461 = vmatpush1.bf16.xpose.msra.mxu0 0
    %462 = vmatprep.subr.bf16.mxu0 0
    %463 = vmatpush1.bf16.xpose.msra.mxu0 0
    %464 = vmatprep.subr.bf16.mxu0 0
    %465 = vmatpush1.bf16.xpose.msra.mxu0 0
    %466 = vmatprep.subr.bf16.mxu0 0
    %467 = vmatpush1.bf16.xpose.msra.mxu0 0
    %468 = vmatprep.subr.bf16.mxu0 0
    %469 = vmatpush1.bf16.xpose.msra.mxu0 0
    %470 = vmatprep.subr.bf16.mxu0 0
    %471 = vmatpush1.bf16.xpose.msra.mxu0 0
    %472 = vmatprep.subr.bf16.mxu0 0
    %473 = vmatpush1.bf16.xpose.msra.mxu0 0
    %474 = vmatprep.subr.bf16.mxu0 0
    %475 = vmatpush1.bf16.xpose.msra.mxu0 0
    %476 = vmatprep.mubr.bf16.mxu0 0
    %477 = vmatmul.mubr.bf16.gmra.mrb[0].mxu0 %v439
    %v478 = vpop.f32.mrb[0].mxu0
    %v479 = vadd.f32 0.0, %v478
    %v480 = vpop.f32.mrb[0].mxu0
    %v481 = vpop.f32.mrb[0].mxu0
    %v482 = vpop.f32.mrb[0].mxu0
    %483 = vdwg.mxu0
    %485 = vrot.lane.b32.xlu0 %v187, 96
    %v486 = vpop.permute.xlu0 %485
    %v488 = vsel %vm192, %v187, 0
    %v491 = vsel %vm192, %v486, 0
    %493 = vmatprep.subr.bf16.mxu0 0
    %494 = vmatpush1.bf16.xpose.msra.mxu0 %v491
    %495 = vmatprep.subr.bf16.mxu0 0
    %496 = vmatpush1.bf16.xpose.msra.mxu0 0
    %497 = vmatprep.subr.bf16.mxu0 0
    %498 = vmatpush1.bf16.xpose.msra.mxu0 0
    %499 = vmatprep.subr.bf16.mxu0 0
    %500 = vmatpush1.bf16.xpose.msra.mxu0 0
    %501 = vmatprep.subr.bf16.mxu0 0
    %502 = vmatpush1.bf16.xpose.msra.mxu0 0
    %503 = vmatprep.subr.bf16.mxu0 0
    %504 = vmatpush1.bf16.xpose.msra.mxu0 0
    %505 = vmatprep.subr.bf16.mxu0 0
    %506 = vmatpush1.bf16.xpose.msra.mxu0 0
    %507 = vmatprep.subr.bf16.mxu0 0
    %508 = vmatpush1.bf16.xpose.msra.mxu0 0
    %509 = vmatprep.subr.bf16.mxu0 0
    %510 = vmatpush1.bf16.xpose.msra.mxu0 0
    %511 = vmatprep.subr.bf16.mxu0 0
    %512 = vmatpush1.bf16.xpose.msra.mxu0 0
    %513 = vmatprep.subr.bf16.mxu0 0
    %514 = vmatpush1.bf16.xpose.msra.mxu0 0
    %515 = vmatprep.subr.bf16.mxu0 0
    %516 = vmatpush1.bf16.xpose.msra.mxu0 0
    %517 = vmatprep.subr.bf16.mxu0 0
    %518 = vmatpush1.bf16.xpose.msra.mxu0 0
    %519 = vmatprep.subr.bf16.mxu0 0
    %520 = vmatpush1.bf16.xpose.msra.mxu0 0
    %521 = vmatprep.subr.bf16.mxu0 0
    %522 = vmatpush1.bf16.xpose.msra.mxu0 0
    %523 = vmatprep.subr.bf16.mxu0 0
    %524 = vmatpush1.bf16.xpose.msra.mxu0 0
    %525 = vmatprep.mubr.bf16.mxu0 0
    %526 = vmatmul.mubr.bf16.gmra.mrb[0].mxu0 %v488
    %v527 = vpop.f32.mrb[0].mxu0
    %v528 = vadd.f32 0.0, %v527
    %v529 = vpop.f32.mrb[0].mxu0
    %v530 = vpop.f32.mrb[0].mxu0
    %v531 = vpop.f32.mrb[0].mxu0
    %532 = vdwg.mxu0
    %534 = vrot.lane.b32.xlu0 %v188, 96
    %v535 = vpop.permute.xlu0 %534
    %v537 = vsel %vm192, %v188, 0
    %v540 = vsel %vm192, %v535, 0
    %542 = vmatprep.subr.bf16.mxu0 0
    %543 = vmatpush1.bf16.xpose.msra.mxu0 %v540
    %544 = vmatprep.subr.bf16.mxu0 0
    %545 = vmatpush1.bf16.xpose.msra.mxu0 0
    %546 = vmatprep.subr.bf16.mxu0 0
    %547 = vmatpush1.bf16.xpose.msra.mxu0 0
    %548 = vmatprep.subr.bf16.mxu0 0
    %549 = vmatpush1.bf16.xpose.msra.mxu0 0
    %550 = vmatprep.subr.bf16.mxu0 0
    %551 = vmatpush1.bf16.xpose.msra.mxu0 0
    %552 = vmatprep.subr.bf16.mxu0 0
    %553 = vmatpush1.bf16.xpose.msra.mxu0 0
    %554 = vmatprep.subr.bf16.mxu0 0
    %555 = vmatpush1.bf16.xpose.msra.mxu0 0
    %556 = vmatprep.subr.bf16.mxu0 0
    %557 = vmatpush1.bf16.xpose.msra.mxu0 0
    %558 = vmatprep.subr.bf16.mxu0 0
    %559 = vmatpush1.bf16.xpose.msra.mxu0 0
    %560 = vmatprep.subr.bf16.mxu0 0
    %561 = vmatpush1.bf16.xpose.msra.mxu0 0
    %562 = vmatprep.subr.bf16.mxu0 0
    %563 = vmatpush1.bf16.xpose.msra.mxu0 0
    %564 = vmatprep.subr.bf16.mxu0 0
    %565 = vmatpush1.bf16.xpose.msra.mxu0 0
    %566 = vmatprep.subr.bf16.mxu0 0
    %567 = vmatpush1.bf16.xpose.msra.mxu0 0
    %568 = vmatprep.subr.bf16.mxu0 0
    %569 = vmatpush1.bf16.xpose.msra.mxu0 0
    %570 = vmatprep.subr.bf16.mxu0 0
    %571 = vmatpush1.bf16.xpose.msra.mxu0 0
    %572 = vmatprep.subr.bf16.mxu0 0
    %573 = vmatpush1.bf16.xpose.msra.mxu0 0
    %574 = vmatprep.mubr.bf16.mxu0 0
    %575 = vmatmul.mubr.bf16.gmra.mrb[0].mxu0 %v537
    %v576 = vpop.f32.mrb[0].mxu0
    %v577 = vadd.f32 0.0, %v576
    %v578 = vpop.f32.mrb[0].mxu0
    %v579 = vpop.f32.mrb[0].mxu0
    %v580 = vpop.f32.mrb[0].mxu0
    %581 = vdwg.mxu0
    %v582 = vmul.f32 %v234, 0.35355338
    %v583 = vmul.f32 %v283, 0.35355338
    %v584 = vmul.f32 %v332, 0.35355338
    %v585 = vmul.f32 %v381, 0.35355338
    %v586 = vmul.f32 %v430, 0.35355338
    %v587 = vmul.f32 %v479, 0.35355338
    %v588 = vmul.f32 %v528, 0.35355338
    %v589 = vmul.f32 %v577, 0.35355338
    %v590 = vsel %vm192, %v582, -inf
    %591 = vmax.xlane.f32.xlu0 %v590
    %v592 = vpop.xlane.xlu0 %591
    %v593 = vsel %vm192, %v583, -inf
    %594 = vmax.xlane.f32.xlu0 %v593
    %v595 = vpop.xlane.xlu0 %594
    %v596 = vsel %vm192, %v584, -inf
    %597 = vmax.xlane.f32.xlu0 %v596
    %v598 = vpop.xlane.xlu0 %597
    %v599 = vsel %vm192, %v585, -inf
    %600 = vmax.xlane.f32.xlu0 %v599
    %v601 = vpop.xlane.xlu0 %600
    %v602 = vsel %vm192, %v586, -inf
    %603 = vmax.xlane.f32.xlu0 %v602
    %v604 = vpop.xlane.xlu0 %603
    %v605 = vsel %vm192, %v587, -inf
    %606 = vmax.xlane.f32.xlu0 %v605
    %v607 = vpop.xlane.xlu0 %606
    %v608 = vsel %vm192, %v588, -inf
    %609 = vmax.xlane.f32.xlu0 %v608
    %v610 = vpop.xlane.xlu0 %609
    %v611 = vsel %vm192, %v589, -inf
    %612 = vmax.xlane.f32.xlu0 %v611
    %v613 = vpop.xlane.xlu0 %612
    %v614 = vsub.f32 %v582, %v592
    %v615 = vsub.f32 %v583, %v595
    %v616 = vsub.f32 %v584, %v598
    %v617 = vsub.f32 %v585, %v601
    %v618 = vsub.f32 %v586, %v604
    %v619 = vsub.f32 %v587, %v607
    %v620 = vsub.f32 %v588, %v610
    %v621 = vsub.f32 %v589, %v613
    %v622 = vmul.f32 %v614, 1.442695
    %v623 = vpow.pop %v622
    %v624 = vmul.f32 %v615, 1.442695
    %v625 = vpow.pop %v624
    %v626 = vmul.f32 %v616, 1.442695
    %v627 = vpow.pop %v626
    %v628 = vmul.f32 %v617, 1.442695
    %v629 = vpow.pop %v628
    %v630 = vmul.f32 %v618, 1.442695
    %v631 = vpow.pop %v630
    %v632 = vmul.f32 %v619, 1.442695
    %v633 = vpow.pop %v632
    %v634 = vmul.f32 %v620, 1.442695
    %v635 = vpow.pop %v634
    %v636 = vmul.f32 %v621, 1.442695
    %v637 = vpow.pop %v636
    %v638 = vsel %vm192, %v623, 0.0
    %639 = vadd.xlane.f32.xlu0 %v638
    %v640 = vpop.xlane.xlu0 %639
    %v641 = vsel %vm192, %v625, 0.0
    %642 = vadd.xlane.f32.xlu0 %v641
    %v643 = vpop.xlane.xlu0 %642
    %v644 = vsel %vm192, %v627, 0.0
    %645 = vadd.xlane.f32.xlu0 %v644
    %v646 = vpop.xlane.xlu0 %645
    %v647 = vsel %vm192, %v629, 0.0
    %648 = vadd.xlane.f32.xlu0 %v647
    %v649 = vpop.xlane.xlu0 %648
    %v650 = vsel %vm192, %v631, 0.0
    %651 = vadd.xlane.f32.xlu0 %v650
    %v652 = vpop.xlane.xlu0 %651
    %v653 = vsel %vm192, %v633, 0.0
    %654 = vadd.xlane.f32.xlu0 %v653
    %v655 = vpop.xlane.xlu0 %654
    %v656 = vsel %vm192, %v635, 0.0
    %657 = vadd.xlane.f32.xlu0 %v656
    %v658 = vpop.xlane.xlu0 %657
    %v659 = vsel %vm192, %v637, 0.0
    %660 = vadd.xlane.f32.xlu0 %v659
    %v661 = vpop.xlane.xlu0 %660
    %v662 = vrcp.pop %v640
    %v663 = vrcp.pop %v643
    %v664 = vrcp.pop %v646
    %v665 = vrcp.pop %v649
    %v666 = vrcp.pop %v652
    %v667 = vrcp.pop %v655
    %v668 = vrcp.pop %v658
    %v669 = vrcp.pop %v661
    %v670 = vmul.f32 %v623, %v662
    %v671 = vmul.f32 %v625, %v663
    %v672 = vmul.f32 %v627, %v664
    %v673 = vmul.f32 %v629, %v665
    %v674 = vmul.f32 %v631, %v666
    %v675 = vmul.f32 %v633, %v667
    %v676 = vmul.f32 %v635, %v668
    %v677 = vmul.f32 %v637, %v669
    %v678 = vpack.c.bf16 %v670, %v670
    %v679 = vpack.c.bf16 %v671, %v671
    %v680 = vpack.c.bf16 %v672, %v672
    %v681 = vpack.c.bf16 %v673, %v673
    %v682 = vpack.c.bf16 %v674, %v674
    %v683 = vpack.c.bf16 %v675, %v675
    %v684 = vpack.c.bf16 %v676, %v676
    %v685 = vpack.c.bf16 %v677, %v677
    %686 = vrot.lane.b32.xlu0 %v181, 64
    %v687 = vpop.permute.xlu0 %686
    %v689 = vsel %vm192, %v678, 0
    %vm691 = vcmask 1043456
    %v693 = vsel %vm691, %v687, 0
    %695 = vmatprep.subr.bf16.mxu0 0
    %696 = vmatpush1.bf16.msra.mxu0 %v693
    %697 = vmatprep.subr.bf16.mxu0 0
    %698 = vmatpush1.bf16.msra.mxu0 0
    %699 = vmatprep.subr.bf16.mxu0 0
    %700 = vmatpush1.bf16.msra.mxu0 0
    %701 = vmatprep.subr.bf16.mxu0 0
    %702 = vmatpush1.bf16.msra.mxu0 0
    %703 = vmatprep.subr.bf16.mxu0 0
    %704 = vmatpush1.bf16.msra.mxu0 0
    %705 = vmatprep.subr.bf16.mxu0 0
    %706 = vmatpush1.bf16.msra.mxu0 0
    %707 = vmatprep.subr.bf16.mxu0 0
    %708 = vmatpush1.bf16.msra.mxu0 0
    %709 = vmatprep.subr.bf16.mxu0 0
    %710 = vmatpush1.bf16.msra.mxu0 0
    %711 = vmatprep.subr.bf16.mxu0 0
    %712 = vmatpush1.bf16.msra.mxu0 0
    %713 = vmatprep.subr.bf16.mxu0 0
    %714 = vmatpush1.bf16.msra.mxu0 0
    %715 = vmatprep.subr.bf16.mxu0 0
    %716 = vmatpush1.bf16.msra.mxu0 0
    %717 = vmatprep.subr.bf16.mxu0 0
    %718 = vmatpush1.bf16.msra.mxu0 0
    %719 = vmatprep.subr.bf16.mxu0 0
    %720 = vmatpush1.bf16.msra.mxu0 0
    %721 = vmatprep.subr.bf16.mxu0 0
    %722 = vmatpush1.bf16.msra.mxu0 0
    %723 = vmatprep.subr.bf16.mxu0 0
    %724 = vmatpush1.bf16.msra.mxu0 0
    %725 = vmatprep.subr.bf16.mxu0 0
    %726 = vmatpush1.bf16.msra.mxu0 0
    %727 = vmatprep.mubr.bf16.mxu0 0
    %728 = vmatmul.mubr.bf16.gmra.mrb[0].mxu0 %v689
    %v729 = vpop.f32.mrb[0].mxu0
    %v730 = vadd.f32 0.0, %v729
    %v731 = vpop.f32.mrb[0].mxu0
    %v732 = vpop.f32.mrb[0].mxu0
    %v733 = vpop.f32.mrb[0].mxu0
    %734 = vdwg.mxu0
    %735 = vrot.lane.b32.xlu0 %v182, 64
    %v736 = vpop.permute.xlu0 %735
    %v738 = vsel %vm192, %v679, 0
    %v741 = vsel %vm691, %v736, 0
    %743 = vmatprep.subr.bf16.mxu0 0
    %744 = vmatpush1.bf16.msra.mxu0 %v741
    %745 = vmatprep.subr.bf16.mxu0 0
    %746 = vmatpush1.bf16.msra.mxu0 0
    %747 = vmatprep.subr.bf16.mxu0 0
    %748 = vmatpush1.bf16.msra.mxu0 0
    %749 = vmatprep.subr.bf16.mxu0 0
    %750 = vmatpush1.bf16.msra.mxu0 0
    %751 = vmatprep.subr.bf16.mxu0 0
    %752 = vmatpush1.bf16.msra.mxu0 0
    %753 = vmatprep.subr.bf16.mxu0 0
    %754 = vmatpush1.bf16.msra.mxu0 0
    %755 = vmatprep.subr.bf16.mxu0 0
    %756 = vmatpush1.bf16.msra.mxu0 0
    %757 = vmatprep.subr.bf16.mxu0 0
    %758 = vmatpush1.bf16.msra.mxu0 0
    %759 = vmatprep.subr.bf16.mxu0 0
    %760 = vmatpush1.bf16.msra.mxu0 0
    %761 = vmatprep.subr.bf16.mxu0 0
    %762 = vmatpush1.bf16.msra.mxu0 0
    %763 = vmatprep.subr.bf16.mxu0 0
    %764 = vmatpush1.bf16.msra.mxu0 0
    %765 = vmatprep.subr.bf16.mxu0 0
    %766 = vmatpush1.bf16.msra.mxu0 0
    %767 = vmatprep.subr.bf16.mxu0 0
    %768 = vmatpush1.bf16.msra.mxu0 0
    %769 = vmatprep.subr.bf16.mxu0 0
    %770 = vmatpush1.bf16.msra.mxu0 0
    %771 = vmatprep.subr.bf16.mxu0 0
    %772 = vmatpush1.bf16.msra.mxu0 0
    %773 = vmatprep.subr.bf16.mxu0 0
    %774 = vmatpush1.bf16.msra.mxu0 0
    %775 = vmatprep.mubr.bf16.mxu0 0
    %776 = vmatmul.mubr.bf16.gmra.mrb[0].mxu0 %v738
    %v777 = vpop.f32.mrb[0].mxu0
    %v778 = vadd.f32 0.0, %v777
    %v779 = vpop.f32.mrb[0].mxu0
    %v780 = vpop.f32.mrb[0].mxu0
    %v781 = vpop.f32.mrb[0].mxu0
    %782 = vdwg.mxu0
    %783 = vrot.lane.b32.xlu0 %v183, 64
    %v784 = vpop.permute.xlu0 %783
    %v786 = vsel %vm192, %v680, 0
    %v789 = vsel %vm691, %v784, 0
    %791 = vmatprep.subr.bf16.mxu0 0
    %792 = vmatpush1.bf16.msra.mxu0 %v789
    %793 = vmatprep.subr.bf16.mxu0 0
    %794 = vmatpush1.bf16.msra.mxu0 0
    %795 = vmatprep.subr.bf16.mxu0 0
    %796 = vmatpush1.bf16.msra.mxu0 0
    %797 = vmatprep.subr.bf16.mxu0 0
    %798 = vmatpush1.bf16.msra.mxu0 0
    %799 = vmatprep.subr.bf16.mxu0 0
    %800 = vmatpush1.bf16.msra.mxu0 0
    %801 = vmatprep.subr.bf16.mxu0 0
    %802 = vmatpush1.bf16.msra.mxu0 0
    %803 = vmatprep.subr.bf16.mxu0 0
    %804 = vmatpush1.bf16.msra.mxu0 0
    %805 = vmatprep.subr.bf16.mxu0 0
    %806 = vmatpush1.bf16.msra.mxu0 0
    %807 = vmatprep.subr.bf16.mxu0 0
    %808 = vmatpush1.bf16.msra.mxu0 0
    %809 = vmatprep.subr.bf16.mxu0 0
    %810 = vmatpush1.bf16.msra.mxu0 0
    %811 = vmatprep.subr.bf16.mxu0 0
    %812 = vmatpush1.bf16.msra.mxu0 0
    %813 = vmatprep.subr.bf16.mxu0 0
    %814 = vmatpush1.bf16.msra.mxu0 0
    %815 = vmatprep.subr.bf16.mxu0 0
    %816 = vmatpush1.bf16.msra.mxu0 0
    %817 = vmatprep.subr.bf16.mxu0 0
    %818 = vmatpush1.bf16.msra.mxu0 0
    %819 = vmatprep.subr.bf16.mxu0 0
    %820 = vmatpush1.bf16.msra.mxu0 0
    %821 = vmatprep.subr.bf16.mxu0 0
    %822 = vmatpush1.bf16.msra.mxu0 0
    %823 = vmatprep.mubr.bf16.mxu0 0
    %824 = vmatmul.mubr.bf16.gmra.mrb[0].mxu0 %v786
    %v825 = vpop.f32.mrb[0].mxu0
    %v826 = vadd.f32 0.0, %v825
    %v827 = vpop.f32.mrb[0].mxu0
    %v828 = vpop.f32.mrb[0].mxu0
    %v829 = vpop.f32.mrb[0].mxu0
    %830 = vdwg.mxu0
    %831 = vrot.lane.b32.xlu0 %v184, 64
    %v832 = vpop.permute.xlu0 %831
    %v834 = vsel %vm192, %v681, 0
    %v837 = vsel %vm691, %v832, 0
    %839 = vmatprep.subr.bf16.mxu0 0
    %840 = vmatpush1.bf16.msra.mxu0 %v837
    %841 = vmatprep.subr.bf16.mxu0 0
    %842 = vmatpush1.bf16.msra.mxu0 0
    %843 = vmatprep.subr.bf16.mxu0 0
    %844 = vmatpush1.bf16.msra.mxu0 0
    %845 = vmatprep.subr.bf16.mxu0 0
    %846 = vmatpush1.bf16.msra.mxu0 0
    %847 = vmatprep.subr.bf16.mxu0 0
    %848 = vmatpush1.bf16.msra.mxu0 0
    %849 = vmatprep.subr.bf16.mxu0 0
    %850 = vmatpush1.bf16.msra.mxu0 0
    %851 = vmatprep.subr.bf16.mxu0 0
    %852 = vmatpush1.bf16.msra.mxu0 0
    %853 = vmatprep.subr.bf16.mxu0 0
    %854 = vmatpush1.bf16.msra.mxu0 0
    %855 = vmatprep.subr.bf16.mxu0 0
    %856 = vmatpush1.bf16.msra.mxu0 0
    %857 = vmatprep.subr.bf16.mxu0 0
    %858 = vmatpush1.bf16.msra.mxu0 0
    %859 = vmatprep.subr.bf16.mxu0 0
    %860 = vmatpush1.bf16.msra.mxu0 0
    %861 = vmatprep.subr.bf16.mxu0 0
    %862 = vmatpush1.bf16.msra.mxu0 0
    %863 = vmatprep.subr.bf16.mxu0 0
    %864 = vmatpush1.bf16.msra.mxu0 0
    %865 = vmatprep.subr.bf16.mxu0 0
    %866 = vmatpush1.bf16.msra.mxu0 0
    %867 = vmatprep.subr.bf16.mxu0 0
    %868 = vmatpush1.bf16.msra.mxu0 0
    %869 = vmatprep.subr.bf16.mxu0 0
    %870 = vmatpush1.bf16.msra.mxu0 0
    %871 = vmatprep.mubr.bf16.mxu0 0
    %872 = vmatmul.mubr.bf16.gmra.mrb[0].mxu0 %v834
    %v873 = vpop.f32.mrb[0].mxu0
    %v874 = vadd.f32 0.0, %v873
    %v875 = vpop.f32.mrb[0].mxu0
    %v876 = vpop.f32.mrb[0].mxu0
    %v877 = vpop.f32.mrb[0].mxu0
    %878 = vdwg.mxu0
    %879 = vrot.lane.b32.xlu0 %v185, 64
    %v880 = vpop.permute.xlu0 %879
    %v882 = vsel %vm192, %v682, 0
    %v885 = vsel %vm691, %v880, 0
    %887 = vmatprep.subr.bf16.mxu0 0
    %888 = vmatpush1.bf16.msra.mxu0 %v885
    %889 = vmatprep.subr.bf16.mxu0 0
    %890 = vmatpush1.bf16.msra.mxu0 0
    %891 = vmatprep.subr.bf16.mxu0 0
    %892 = vmatpush1.bf16.msra.mxu0 0
    %893 = vmatprep.subr.bf16.mxu0 0
    %894 = vmatpush1.bf16.msra.mxu0 0
    %895 = vmatprep.subr.bf16.mxu0 0
    %896 = vmatpush1.bf16.msra.mxu0 0
    %897 = vmatprep.subr.bf16.mxu0 0
    %898 = vmatpush1.bf16.msra.mxu0 0
    %899 = vmatprep.subr.bf16.mxu0 0
    %900 = vmatpush1.bf16.msra.mxu0 0
    %901 = vmatprep.subr.bf16.mxu0 0
    %902 = vmatpush1.bf16.msra.mxu0 0
    %903 = vmatprep.subr.bf16.mxu0 0
    %904 = vmatpush1.bf16.msra.mxu0 0
    %905 = vmatprep.subr.bf16.mxu0 0
    %906 = vmatpush1.bf16.msra.mxu0 0
    %907 = vmatprep.subr.bf16.mxu0 0
    %908 = vmatpush1.bf16.msra.mxu0 0
    %909 = vmatprep.subr.bf16.mxu0 0
    %910 = vmatpush1.bf16.msra.mxu0 0
    %911 = vmatprep.subr.bf16.mxu0 0
    %912 = vmatpush1.bf16.msra.mxu0 0
    %913 = vmatprep.subr.bf16.mxu0 0
    %914 = vmatpush1.bf16.msra.mxu0 0
    %915 = vmatprep.subr.bf16.mxu0 0
    %916 = vmatpush1.bf16.msra.mxu0 0
    %917 = vmatprep.subr.bf16.mxu0 0
    %918 = vmatpush1.bf16.msra.mxu0 0
    %919 = vmatprep.mubr.bf16.mxu0 0
    %920 = vmatmul.mubr.bf16.gmra.mrb[0].mxu0 %v882
    %v921 = vpop.f32.mrb[0].mxu0
    %v922 = vadd.f32 0.0, %v921
    %v923 = vpop.f32.mrb[0].mxu0
    %v924 = vpop.f32.mrb[0].mxu0
    %v925 = vpop.f32.mrb[0].mxu0
    %926 = vdwg.mxu0
    %927 = vrot.lane.b32.xlu0 %v186, 64
    %v928 = vpop.permute.xlu0 %927
    %v930 = vsel %vm192, %v683, 0
    %v933 = vsel %vm691, %v928, 0
    %935 = vmatprep.subr.bf16.mxu0 0
    %936 = vmatpush1.bf16.msra.mxu0 %v933
    %937 = vmatprep.subr.bf16.mxu0 0
    %938 = vmatpush1.bf16.msra.mxu0 0
    %939 = vmatprep.subr.bf16.mxu0 0
    %940 = vmatpush1.bf16.msra.mxu0 0
    %941 = vmatprep.subr.bf16.mxu0 0
    %942 = vmatpush1.bf16.msra.mxu0 0
    %943 = vmatprep.subr.bf16.mxu0 0
    %944 = vmatpush1.bf16.msra.mxu0 0
    %945 = vmatprep.subr.bf16.mxu0 0
    %946 = vmatpush1.bf16.msra.mxu0 0
    %947 = vmatprep.subr.bf16.mxu0 0
    %948 = vmatpush1.bf16.msra.mxu0 0
    %949 = vmatprep.subr.bf16.mxu0 0
    %950 = vmatpush1.bf16.msra.mxu0 0
    %951 = vmatprep.subr.bf16.mxu0 0
    %952 = vmatpush1.bf16.msra.mxu0 0
    %953 = vmatprep.subr.bf16.mxu0 0
    %954 = vmatpush1.bf16.msra.mxu0 0
    %955 = vmatprep.subr.bf16.mxu0 0
    %956 = vmatpush1.bf16.msra.mxu0 0
    %957 = vmatprep.subr.bf16.mxu0 0
    %958 = vmatpush1.bf16.msra.mxu0 0
    %959 = vmatprep.subr.bf16.mxu0 0
    %960 = vmatpush1.bf16.msra.mxu0 0
    %961 = vmatprep.subr.bf16.mxu0 0
    %962 = vmatpush1.bf16.msra.mxu0 0
    %963 = vmatprep.subr.bf16.mxu0 0
    %964 = vmatpush1.bf16.msra.mxu0 0
    %965 = vmatprep.subr.bf16.mxu0 0
    %966 = vmatpush1.bf16.msra.mxu0 0
    %967 = vmatprep.mubr.bf16.mxu0 0
    %968 = vmatmul.mubr.bf16.gmra.mrb[0].mxu0 %v930
    %v969 = vpop.f32.mrb[0].mxu0
    %v970 = vadd.f32 0.0, %v969
    %v971 = vpop.f32.mrb[0].mxu0
    %v972 = vpop.f32.mrb[0].mxu0
    %v973 = vpop.f32.mrb[0].mxu0
    %974 = vdwg.mxu0
    %975 = vrot.lane.b32.xlu0 %v187, 64
    %v976 = vpop.permute.xlu0 %975
    %v978 = vsel %vm192, %v684, 0
    %v981 = vsel %vm691, %v976, 0
    %983 = vmatprep.subr.bf16.mxu0 0
    %984 = vmatpush1.bf16.msra.mxu0 %v981
    %985 = vmatprep.subr.bf16.mxu0 0
    %986 = vmatpush1.bf16.msra.mxu0 0
    %987 = vmatprep.subr.bf16.mxu0 0
    %988 = vmatpush1.bf16.msra.mxu0 0
    %989 = vmatprep.subr.bf16.mxu0 0
    %990 = vmatpush1.bf16.msra.mxu0 0
    %991 = vmatprep.subr.bf16.mxu0 0
    %992 = vmatpush1.bf16.msra.mxu0 0
    %993 = vmatprep.subr.bf16.mxu0 0
    %994 = vmatpush1.bf16.msra.mxu0 0
    %995 = vmatprep.subr.bf16.mxu0 0
    %996 = vmatpush1.bf16.msra.mxu0 0
    %997 = vmatprep.subr.bf16.mxu0 0
    %998 = vmatpush1.bf16.msra.mxu0 0
    %999 = vmatprep.subr.bf16.mxu0 0
    %1000 = vmatpush1.bf16.msra.mxu0 0
    %1001 = vmatprep.subr.bf16.mxu0 0
    %1002 = vmatpush1.bf16.msra.mxu0 0
    %1003 = vmatprep.subr.bf16.mxu0 0
    %1004 = vmatpush1.bf16.msra.mxu0 0
    %1005 = vmatprep.subr.bf16.mxu0 0
    %1006 = vmatpush1.bf16.msra.mxu0 0
    %1007 = vmatprep.subr.bf16.mxu0 0
    %1008 = vmatpush1.bf16.msra.mxu0 0
    %1009 = vmatprep.subr.bf16.mxu0 0
    %1010 = vmatpush1.bf16.msra.mxu0 0
    %1011 = vmatprep.subr.bf16.mxu0 0
    %1012 = vmatpush1.bf16.msra.mxu0 0
    %1013 = vmatprep.subr.bf16.mxu0 0
    %1014 = vmatpush1.bf16.msra.mxu0 0
    %1015 = vmatprep.mubr.bf16.mxu0 0
    %1016 = vmatmul.mubr.bf16.gmra.mrb[0].mxu0 %v978
    %v1017 = vpop.f32.mrb[0].mxu0
    %v1018 = vadd.f32 0.0, %v1017
    %v1019 = vpop.f32.mrb[0].mxu0
    %v1020 = vpop.f32.mrb[0].mxu0
    %v1021 = vpop.f32.mrb[0].mxu0
    %1022 = vdwg.mxu0
    %1023 = vrot.lane.b32.xlu0 %v188, 64
    %v1024 = vpop.permute.xlu0 %1023
    %v1026 = vsel %vm192, %v685, 0
    %v1029 = vsel %vm691, %v1024, 0
    %1031 = vmatprep.subr.bf16.mxu0 0
    %1032 = vmatpush1.bf16.msra.mxu0 %v1029
    %1033 = vmatprep.subr.bf16.mxu0 0
    %1034 = vmatpush1.bf16.msra.mxu0 0
    %1035 = vmatprep.subr.bf16.mxu0 0
    %1036 = vmatpush1.bf16.msra.mxu0 0
    %1037 = vmatprep.subr.bf16.mxu0 0
    %1038 = vmatpush1.bf16.msra.mxu0 0
    %1039 = vmatprep.subr.bf16.mxu0 0
    %1040 = vmatpush1.bf16.msra.mxu0 0
    %1041 = vmatprep.subr.bf16.mxu0 0
    %1042 = vmatpush1.bf16.msra.mxu0 0
    %1043 = vmatprep.subr.bf16.mxu0 0
    %1044 = vmatpush1.bf16.msra.mxu0 0
    %1045 = vmatprep.subr.bf16.mxu0 0
    %1046 = vmatpush1.bf16.msra.mxu0 0
    %1047 = vmatprep.subr.bf16.mxu0 0
    %1048 = vmatpush1.bf16.msra.mxu0 0
    %1049 = vmatprep.subr.bf16.mxu0 0
    %1050 = vmatpush1.bf16.msra.mxu0 0
    %1051 = vmatprep.subr.bf16.mxu0 0
    %1052 = vmatpush1.bf16.msra.mxu0 0
    %1053 = vmatprep.subr.bf16.mxu0 0
    %1054 = vmatpush1.bf16.msra.mxu0 0
    %1055 = vmatprep.subr.bf16.mxu0 0
    %1056 = vmatpush1.bf16.msra.mxu0 0
    %1057 = vmatprep.subr.bf16.mxu0 0
    %1058 = vmatpush1.bf16.msra.mxu0 0
    %1059 = vmatprep.subr.bf16.mxu0 0
    %1060 = vmatpush1.bf16.msra.mxu0 0
    %1061 = vmatprep.subr.bf16.mxu0 0
    %1062 = vmatpush1.bf16.msra.mxu0 0
    %1063 = vmatprep.mubr.bf16.mxu0 0
    %1064 = vmatmul.mubr.bf16.gmra.mrb[0].mxu0 %v1026
    %v1065 = vpop.f32.mrb[0].mxu0
    %v1066 = vadd.f32 0.0, %v1065
    %v1067 = vpop.f32.mrb[0].mxu0
    %v1068 = vpop.f32.mrb[0].mxu0
    %v1069 = vpop.f32.mrb[0].mxu0
    %1070 = vdwg.mxu0
    %v1071 = vpack.c.bf16 %v778, %v730
    %v1072 = vpack.c.bf16 %v874, %v826
    %v1073 = vpack.c.bf16 %v970, %v922
    %v1074 = vpack.c.bf16 %v1066, %v1018
    %v1075 = vld [vmem:[%s3] sm:$0xf]
    %v1076 = vld [vmem:[%s3 + $0x4] sm:$0xf]
    %v1077 = vld [vmem:[%s3 + $0x8] sm:$0xf]
    %v1078 = vld [vmem:[%s3 + $0xc] sm:$0xf]
    %v1080 = vsel %vm192, %v1071, 0
    %v1083 = vsel %vm691, %v1075, 0
    %1085 = vmatprep.subr.bf16.mxu0 0
    %1086 = vmatpush1.bf16.msra.mxu0 %v1083
    %1087 = vmatprep.subr.bf16.mxu0 0
    %1088 = vmatpush1.bf16.msra.mxu0 0
    %1089 = vmatprep.subr.bf16.mxu0 0
    %1090 = vmatpush1.bf16.msra.mxu0 0
    %1091 = vmatprep.subr.bf16.mxu0 0
    %1092 = vmatpush1.bf16.msra.mxu0 0
    %1093 = vmatprep.subr.bf16.mxu0 0
    %1094 = vmatpush1.bf16.msra.mxu0 0
    %1095 = vmatprep.subr.bf16.mxu0 0
    %1096 = vmatpush1.bf16.msra.mxu0 0
    %1097 = vmatprep.subr.bf16.mxu0 0
    %1098 = vmatpush1.bf16.msra.mxu0 0
    %1099 = vmatprep.subr.bf16.mxu0 0
    %1100 = vmatpush1.bf16.msra.mxu0 0
    %1101 = vmatprep.subr.bf16.mxu0 0
    %1102 = vmatpush1.bf16.msra.mxu0 0
    %1103 = vmatprep.subr.bf16.mxu0 0
    %1104 = vmatpush1.bf16.msra.mxu0 0
    %1105 = vmatprep.subr.bf16.mxu0 0
    %1106 = vmatpush1.bf16.msra.mxu0 0
    %1107 = vmatprep.subr.bf16.mxu0 0
    %1108 = vmatpush1.bf16.msra.mxu0 0
    %1109 = vmatprep.subr.bf16.mxu0 0
    %1110 = vmatpush1.bf16.msra.mxu0 0
    %1111 = vmatprep.subr.bf16.mxu0 0
    %1112 = vmatpush1.bf16.msra.mxu0 0
    %1113 = vmatprep.subr.bf16.mxu0 0
    %1114 = vmatpush1.bf16.msra.mxu0 0
    %1115 = vmatprep.subr.bf16.mxu0 0
    %1116 = vmatpush1.bf16.msra.mxu0 0
    %1117 = vmatprep.mubr.bf16.mxu0 0
    %1118 = vmatmul.mubr.bf16.gmra.mrb[0].mxu0 %v1080
    %v1119 = vpop.f32.mrb[0].mxu0
    %v1120 = vadd.f32 0.0, %v1119
    %v1121 = vpop.f32.mrb[0].mxu0
    %v1122 = vpop.f32.mrb[0].mxu0
    %v1123 = vadd.f32 0.0, %v1122
    %v1124 = vpop.f32.mrb[0].mxu0
    %1125 = vdwg.mxu0
    %v1127 = vsel %vm192, %v1072, 0
    %v1130 = vsel %vm691, %v1076, 0
    %1132 = vmatprep.subr.bf16.mxu0 0
    %1133 = vmatpush1.bf16.msra.mxu0 %v1130
    %1134 = vmatprep.subr.bf16.mxu0 0
    %1135 = vmatpush1.bf16.msra.mxu0 0
    %1136 = vmatprep.subr.bf16.mxu0 0
    %1137 = vmatpush1.bf16.msra.mxu0 0
    %1138 = vmatprep.subr.bf16.mxu0 0
    %1139 = vmatpush1.bf16.msra.mxu0 0
    %1140 = vmatprep.subr.bf16.mxu0 0
    %1141 = vmatpush1.bf16.msra.mxu0 0
    %1142 = vmatprep.subr.bf16.mxu0 0
    %1143 = vmatpush1.bf16.msra.mxu0 0
    %1144 = vmatprep.subr.bf16.mxu0 0
    %1145 = vmatpush1.bf16.msra.mxu0 0
    %1146 = vmatprep.subr.bf16.mxu0 0
    %1147 = vmatpush1.bf16.msra.mxu0 0
    %1148 = vmatprep.subr.bf16.mxu0 0
    %1149 = vmatpush1.bf16.msra.mxu0 0
    %1150 = vmatprep.subr.bf16.mxu0 0
    %1151 = vmatpush1.bf16.msra.mxu0 0
    %1152 = vmatprep.subr.bf16.mxu0 0
    %1153 = vmatpush1.bf16.msra.mxu0 0
    %1154 = vmatprep.subr.bf16.mxu0 0
    %1155 = vmatpush1.bf16.msra.mxu0 0
    %1156 = vmatprep.subr.bf16.mxu0 0
    %1157 = vmatpush1.bf16.msra.mxu0 0
    %1158 = vmatprep.subr.bf16.mxu0 0
    %1159 = vmatpush1.bf16.msra.mxu0 0
    %1160 = vmatprep.subr.bf16.mxu0 0
    %1161 = vmatpush1.bf16.msra.mxu0 0
    %1162 = vmatprep.subr.bf16.mxu0 0
    %1163 = vmatpush1.bf16.msra.mxu0 0
    %1164 = vmatprep.mubr.bf16.mxu0 0
    %1165 = vmatmul.mubr.bf16.gmra.mrb[0].mxu0 %v1127
    %v1166 = vpop.f32.mrb[0].mxu0
    %v1167 = vadd.f32 0.0, %v1166
    %v1168 = vpop.f32.mrb[0].mxu0
    %v1169 = vpop.f32.mrb[0].mxu0
    %v1170 = vadd.f32 0.0, %v1169
    %v1171 = vpop.f32.mrb[0].mxu0
    %1172 = vdwg.mxu0
    %v1174 = vsel %vm192, %v1073, 0
    %v1177 = vsel %vm691, %v1077, 0
    %1179 = vmatprep.subr.bf16.mxu0 0
    %1180 = vmatpush1.bf16.msra.mxu0 %v1177
    %1181 = vmatprep.subr.bf16.mxu0 0
    %1182 = vmatpush1.bf16.msra.mxu0 0
    %1183 = vmatprep.subr.bf16.mxu0 0
    %1184 = vmatpush1.bf16.msra.mxu0 0
    %1185 = vmatprep.subr.bf16.mxu0 0
    %1186 = vmatpush1.bf16.msra.mxu0 0
    %1187 = vmatprep.subr.bf16.mxu0 0
    %1188 = vmatpush1.bf16.msra.mxu0 0
    %1189 = vmatprep.subr.bf16.mxu0 0
    %1190 = vmatpush1.bf16.msra.mxu0 0
    %1191 = vmatprep.subr.bf16.mxu0 0
    %1192 = vmatpush1.bf16.msra.mxu0 0
    %1193 = vmatprep.subr.bf16.mxu0 0
    %1194 = vmatpush1.bf16.msra.mxu0 0
    %1195 = vmatprep.subr.bf16.mxu0 0
    %1196 = vmatpush1.bf16.msra.mxu0 0
    %1197 = vmatprep.subr.bf16.mxu0 0
    %1198 = vmatpush1.bf16.msra.mxu0 0
    %1199 = vmatprep.subr.bf16.mxu0 0
    %1200 = vmatpush1.bf16.msra.mxu0 0
    %1201 = vmatprep.subr.bf16.mxu0 0
    %1202 = vmatpush1.bf16.msra.mxu0 0
    %1203 = vmatprep.subr.bf16.mxu0 0
    %1204 = vmatpush1.bf16.msra.mxu0 0
    %1205 = vmatprep.subr.bf16.mxu0 0
    %1206 = vmatpush1.bf16.msra.mxu0 0
    %1207 = vmatprep.subr.bf16.mxu0 0
    %1208 = vmatpush1.bf16.msra.mxu0 0
    %1209 = vmatprep.subr.bf16.mxu0 0
    %1210 = vmatpush1.bf16.msra.mxu0 0
    %1211 = vmatprep.mubr.bf16.mxu0 0
    %1212 = vmatmul.mubr.bf16.gmra.mrb[0].mxu0 %v1174
    %v1213 = vpop.f32.mrb[0].mxu0
    %v1214 = vadd.f32 0.0, %v1213
    %v1215 = vpop.f32.mrb[0].mxu0
    %v1216 = vpop.f32.mrb[0].mxu0
    %v1217 = vadd.f32 0.0, %v1216
    %v1218 = vpop.f32.mrb[0].mxu0
    %1219 = vdwg.mxu0
    %v1221 = vsel %vm192, %v1074, 0
    %v1224 = vsel %vm691, %v1078, 0
    %1226 = vmatprep.subr.bf16.mxu0 0
    %1227 = vmatpush1.bf16.msra.mxu0 %v1224
    %1228 = vmatprep.subr.bf16.mxu0 0
    %1229 = vmatpush1.bf16.msra.mxu0 0
    %1230 = vmatprep.subr.bf16.mxu0 0
    %1231 = vmatpush1.bf16.msra.mxu0 0
    %1232 = vmatprep.subr.bf16.mxu0 0
    %1233 = vmatpush1.bf16.msra.mxu0 0
    %1234 = vmatprep.subr.bf16.mxu0 0
    %1235 = vmatpush1.bf16.msra.mxu0 0
    %1236 = vmatprep.subr.bf16.mxu0 0
    %1237 = vmatpush1.bf16.msra.mxu0 0
    %1238 = vmatprep.subr.bf16.mxu0 0
    %1239 = vmatpush1.bf16.msra.mxu0 0
    %1240 = vmatprep.subr.bf16.mxu0 0
    %1241 = vmatpush1.bf16.msra.mxu0 0
    %1242 = vmatprep.subr.bf16.mxu0 0
    %1243 = vmatpush1.bf16.msra.mxu0 0
    %1244 = vmatprep.subr.bf16.mxu0 0
    %1245 = vmatpush1.bf16.msra.mxu0 0
    %1246 = vmatprep.subr.bf16.mxu0 0
    %1247 = vmatpush1.bf16.msra.mxu0 0
    %1248 = vmatprep.subr.bf16.mxu0 0
    %1249 = vmatpush1.bf16.msra.mxu0 0
    %1250 = vmatprep.subr.bf16.mxu0 0
    %1251 = vmatpush1.bf16.msra.mxu0 0
    %1252 = vmatprep.subr.bf16.mxu0 0
    %1253 = vmatpush1.bf16.msra.mxu0 0
    %1254 = vmatprep.subr.bf16.mxu0 0
    %1255 = vmatpush1.bf16.msra.mxu0 0
    %1256 = vmatprep.subr.bf16.mxu0 0
    %1257 = vmatpush1.bf16.msra.mxu0 0
    %1258 = vmatprep.mubr.bf16.mxu0 0
    %1259 = vmatmul.mubr.bf16.gmra.mrb[0].mxu0 %v1221
    %v1260 = vpop.f32.mrb[0].mxu0
    %v1261 = vadd.f32 0.0, %v1260
    %v1262 = vpop.f32.mrb[0].mxu0
    %v1263 = vpop.f32.mrb[0].mxu0
    %v1264 = vadd.f32 0.0, %v1263
    %v1265 = vpop.f32.mrb[0].mxu0
    %1266 = vdwg.mxu0
    %v1267 = vadd.f32 %v1120, %v1167
    %v1268 = vadd.f32 %v1123, %v1170
    %v1269 = vadd.f32 %v1267, %v1214
    %v1270 = vadd.f32 %v1268, %v1217
    %v1271 = vadd.f32 %v1269, %v1261
    %v1272 = vadd.f32 %v1270, %v1264
    %v1273 = vld [vmem:[%s4] sm:$0x1]
    %v1275 = vlaneseq
    %v1276 = vshrl.u32 %v1275, 7
    %v1277 = vsub.s32 0, %v1276
    %v1278 = vrot.slane %v1273, %v1277
    %v1280 = vadd.f32 %v1271, %v1278
    %v1281 = vadd.f32 %v1272, %v1278
    %v1282 = vadd.f32 %v46, %v1280
    %v1283 = vadd.f32 %v47, %v1281
    %v1284 = vld [vmem:[%s5] sm:$0x1]
    %v1285 = vld [vmem:[%s6] sm:$0x1]
    %v1286 = vsel %vm98, %v1282, 0.0
    %1287 = vadd.xlane.f32.xlu0 %v1286
    %v1288 = vpop.xlane.xlu0 %1287
    %v1289 = vsel %vm98, %v1283, 0.0
    %1290 = vadd.xlane.f32.xlu0 %v1289
    %v1291 = vpop.xlane.xlu0 %1290
    %v1292 = vrcp.pop 32.0
    %v1293 = vmul.f32 %v1288, %v1292
    %v1294 = vmul.f32 %v1291, %v1292
    %v1295 = vsub.f32 %v1282, %v1293
    %v1296 = vsub.f32 %v1283, %v1294
    %v1297 = vmul.f32 %v1295, %v1295
    %v1298 = vmul.f32 %v1296, %v1296
    %v1299 = vsel %vm98, %v1297, 0.0
    %1300 = vadd.xlane.f32.xlu0 %v1299
    %v1301 = vpop.xlane.xlu0 %1300
    %v1302 = vsel %vm98, %v1298, 0.0
    %1303 = vadd.xlane.f32.xlu0 %v1302
    %v1304 = vpop.xlane.xlu0 %1303
    %v1305 = vmul.f32 %v1301, %v1292
    %v1306 = vmul.f32 %v1304, %v1292
    %v1307 = vadd.f32 %v1305, 1e-05
    %v1308 = vadd.f32 %v1306, 1e-05
    %v1309 = vrsqrt.pop %v1307
    %v1310 = vrsqrt.pop %v1308
    %v1311 = vmul.f32 %v1295, %v1309
    %v1312 = vmul.f32 %v1296, %v1310
    %v1314 = vlaneseq
    %v1315 = vshrl.u32 %v1314, 7
    %v1316 = vsub.s32 0, %v1315
    %v1317 = vrot.slane %v1284, %v1316
    %v1319 = vmul.f32 %v1311, %v1317
    %v1320 = vmul.f32 %v1312, %v1317
    %v1322 = vlaneseq
    %v1323 = vshrl.u32 %v1322, 7
    %v1324 = vsub.s32 0, %v1323
    %v1325 = vrot.slane %v1285, %v1324
    %v1327 = vadd.f32 %v1319, %v1325
    %v1328 = vadd.f32 %v1320, %v1325
    %v1329 = vpack.c.bf16 %v1328, %v1327
    %v1330 = vld [vmem:[%s7] sm:$0xf]
    %v1331 = vld [vmem:[%s7 + $0x4] sm:$0xf]
    %v1332 = vld [vmem:[%s7 + $0x8] sm:$0xf]
    %v1333 = vld [vmem:[%s7 + $0xc] sm:$0xf]
    %v1334 = vld [vmem:[%s7 + $0x10] sm:$0xf]
    %v1335 = vld [vmem:[%s7 + $0x14] sm:$0xf]
    %v1336 = vld [vmem:[%s7 + $0x18] sm:$0xf]
    %v1337 = vld [vmem:[%s7 + $0x1c] sm:$0xf]
    %v1338 = vld [vmem:[%s8] sm:$0x1]
    %v1340 = vlaneseq
    %v1341 = vshrl.u32 %v1340, 7
    %v1342 = vsub.s32 0, %v1341
    %v1343 = vrot.slane %v1338, %v1342
    %v1353 = vunpack.c.l.b16 %v1330
    %v1354 = vunpack.c.l.b16 %v1331
    %v1355 = vunpack.c.l.b16 %v1332
    %v1356 = vunpack.c.l.b16 %v1333
    %v1357 = vunpack.c.l.b16 %v1334
    %v1358 = vunpack.c.l.b16 %v1335
    %v1359 = vunpack.c.l.b16 %v1336
    %v1360 = vunpack.c.l.b16 %v1337
    %v1361 = vpack.c.b16 %v1354, %v1353
    %v1362 = vpack.c.b16 %v1356, %v1355
    %v1363 = vpack.c.b16 %v1358, %v1357
    %v1364 = vpack.c.b16 %v1360, %v1359
    %v1366 = vsel %vm98, %v1329, 0
    %v1369 = vsel %vm98, %v1361, 0
    %v1372 = vsel %vm98, %v1362, 0
    %v1375 = vsel %vm98, %v1363, 0
    %v1378 = vsel %vm98, %v1364, 0
    %1380 = vmatprep.subr.bf16.mxu0 0
    %1381 = vmatpush1.bf16.xpose.msra.mxu0 %v1369
    %1382 = vmatprep.subr.bf16.mxu0 0
    %1383 = vmatpush1.bf16.xpose.msra.mxu0 %v1372
    %1384 = vmatprep.subr.bf16.mxu0 0
    %1385 = vmatpush1.bf16.xpose.msra.mxu0 %v1375
    %1386 = vmatprep.subr.bf16.mxu0 0
    %1387 = vmatpush1.bf16.xpose.msra.mxu0 %v1378
    %1388 = vmatprep.subr.bf16.mxu0 0
    %1389 = vmatpush1.bf16.xpose.msra.mxu0 0
    %1390 = vmatprep.subr.bf16.mxu0 0
    %1391 = vmatpush1.bf16.xpose.msra.mxu0 0
    %1392 = vmatprep.subr.bf16.mxu0 0
    %1393 = vmatpush1.bf16.xpose.msra.mxu0 0
    %1394 = vmatprep.subr.bf16.mxu0 0
    %1395 = vmatpush1.bf16.xpose.msra.mxu0 0
    %1396 = vmatprep.subr.bf16.mxu0 0
    %1397 = vmatpush1.bf16.xpose.msra.mxu0 0
    %1398 = vmatprep.subr.bf16.mxu0 0
    %1399 = vmatpush1.bf16.xpose.msra.mxu0 0
    %1400 = vmatprep.subr.bf16.mxu0 0
    %1401 = vmatpush1.bf16.xpose.msra.mxu0 0
    %1402 = vmatprep.subr.bf16.mxu0 0
    %1403 = vmatpush1.bf16.xpose.msra.mxu0 0
    %1404 = vmatprep.subr.bf16.mxu0 0
    %1405 = vmatpush1.bf16.xpose.msra.mxu0 0
    %1406 = vmatprep.subr.bf16.mxu0 0
    %1407 = vmatpush1.bf16.xpose.msra.mxu0 0
    %1408 = vmatprep.subr.bf16.mxu0 0
    %1409 = vmatpush1.bf16.xpose.msra.mxu0 0
    %1410 = vmatprep.subr.bf16.mxu0 0
    %1411 = vmatpush1.bf16.xpose.msra.mxu0 0
    %1412 = vmatprep.mubr.bf16.mxu0 0
    %1413 = vmatmul.mubr.bf16.gmra.mrb[0].mxu0 %v1366
    %v1414 = vpop.f32.mrb[0].mxu0
    %v1415 = vadd.f32 %v1343, %v1414
    %v1416 = vpop.f32.mrb[0].mxu0
    %v1417 = vpop.f32.mrb[0].mxu0
    %v1418 = vadd.f32 %v1343, %v1417
    %v1419 = vpop.f32.mrb[0].mxu0
    %1420 = vdwg.mxu0
    %v1421 = vmul.f32 %v1415, 0.5
    %v1422 = vmul.f32 %v1418, 0.5
    %v1423 = vmul.f32 %v1415, 0.70710677
    %v1424 = vmul.f32 %v1418, 0.70710677
    %vm1425 = vcmp.ge.f32.partialorder %v1423, 0.0
    %vm1426 = vcmp.ge.f32.partialorder %v1424, 0.0
    %v1427 = vsel %vm1425, 1.0, -1.0
    %v1428 = vsel %vm1426, 1.0, -1.0
    %v1429 = vand.u32 2147483647, %v1423
    %v1430 = vand.u32 2147483647, %v1424
    %v1431 = vmul.f32 %v1429, 0.3275911
    %v1432 = vmul.f32 %v1430, 0.3275911
    %v1433 = vadd.f32 %v1431, 1.0
    %v1434 = vadd.f32 %v1432, 1.0
    %v1435 = vrcp.pop %v1433
    %v1436 = vrcp.pop %v1434
    %v1437 = vmul.f32 %v1435, 1.0614054
    %v1438 = vmul.f32 %v1436, 1.0614054
    %v1439 = vadd.f32 %v1437, -1.4531521
    %v1440 = vadd.f32 %v1438, -1.4531521
    %v1441 = vmul.f32 %v1439, %v1435
    %v1442 = vmul.f32 %v1440, %v1436
    %v1443 = vadd.f32 %v1441, 1.4214138
    %v1444 = vadd.f32 %v1442, 1.4214138
    %v1445 = vmul.f32 %v1443, %v1435
    %v1446 = vmul.f32 %v1444, %v1436
    %v1447 = vadd.f32 %v1445, -0.28449672
    %v1448 = vadd.f32 %v1446, -0.28449672
    %v1449 = vmul.f32 %v1447, %v1435
    %v1450 = vmul.f32 %v1448, %v1436
    %v1451 = vadd.f32 %v1449, 0.2548296
    %v1452 = vadd.f32 %v1450, 0.2548296
    %v1453 = vmul.f32 %v1451, %v1435
    %v1454 = vmul.f32 %v1452, %v1436
    %v1455 = vsub.f32 0.0, %v1429
    %v1456 = vsub.f32 0.0, %v1430
    %v1457 = vmul.f32 %v1455, %v1429
    %v1458 = vmul.f32 %v1456, %v1430
    %v1459 = vmul.f32 %v1457, 1.442695
    %v1460 = vpow.pop %v1459
    %v1461 = vmul.f32 %v1458, 1.442695
    %v1462 = vpow.pop %v1461
    %v1463 = vmul.f32 %v1453, %v1460
    %v1464 = vmul.f32 %v1454, %v1462
    %v1465 = vsub.f32 1.0, %v1463
    %v1466 = vsub.f32 1.0, %v1464
    %v1467 = vmul.f32 %v1427, %v1465
    %v1468 = vmul.f32 %v1428, %v1466
    %v1469 = vadd.f32 %v1467, 1.0
    %v1470 = vadd.f32 %v1468, 1.0
    %v1471 = vmul.f32 %v1421, %v1469
    %v1472 = vmul.f32 %v1422, %v1470
    %v1473 = vpack.c.bf16 %v1472, %v1471
    %v1474 = vld [vmem:[%s9] sm:$0xf]
    %v1475 = vld [vmem:[%s9 + $0x4] sm:$0xf]
    %v1476 = vld [vmem:[%s9 + $0x8] sm:$0xf]
    %v1477 = vld [vmem:[%s9 + $0xc] sm:$0xf]
    %v1478 = vld [vmem:[%s10] sm:$0x1]
    %v1480 = vlaneseq
    %v1481 = vshrl.u32 %v1480, 7
    %v1482 = vsub.s32 0, %v1481
    %v1483 = vrot.slane %v1478, %v1482
    %v1489 = vunpack.c.l.b16 %v1474
    %v1490 = vunpack.c.l.b16 %v1475
    %v1491 = vunpack.c.l.b16 %v1476
    %v1492 = vunpack.c.l.b16 %v1477
    %v1493 = vpack.c.b16 %v1490, %v1489
    %v1494 = vpack.c.b16 %v1492, %v1491
    %vm1495 = vcmask 523264
    %v1497 = vsel %vm1495, %v1473, 0
    %v1500 = vsel %vm1495, %v1493, 0
    %v1503 = vsel %vm1495, %v1494, 0
    %1505 = vmatprep.subr.bf16.mxu0 0
    %1506 = vmatpush1.bf16.xpose.msra.mxu0 %v1500
    %1507 = vmatprep.subr.bf16.mxu0 0
    %1508 = vmatpush1.bf16.xpose.msra.mxu0 %v1503
    %1509 = vmatprep.subr.bf16.mxu0 0
    %1510 = vmatpush1.bf16.xpose.msra.mxu0 0
    %1511 = vmatprep.subr.bf16.mxu0 0
    %1512 = vmatpush1.bf16.xpose.msra.mxu0 0
    %1513 = vmatprep.subr.bf16.mxu0 0
    %1514 = vmatpush1.bf16.xpose.msra.mxu0 0
    %1515 = vmatprep.subr.bf16.mxu0 0
    %1516 = vmatpush1.bf16.xpose.msra.mxu0 0
    %1517 = vmatprep.subr.bf16.mxu0 0
    %1518 = vmatpush1.bf16.xpose.msra.mxu0 0
    %1519 = vmatprep.subr.bf16.mxu0 0
    %1520 = vmatpush1.bf16.xpose.msra.mxu0 0
    %1521 = vmatprep.subr.bf16.mxu0 0
    %1522 = vmatpush1.bf16.xpose.msra.mxu0 0
    %1523 = vmatprep.subr.bf16.mxu0 0
    %1524 = vmatpush1.bf16.xpose.msra.mxu0 0
    %1525 = vmatprep.subr.bf16.mxu0 0
    %1526 = vmatpush1.bf16.xpose.msra.mxu0 0
    %1527 = vmatprep.subr.bf16.mxu0 0
    %1528 = vmatpush1.bf16.xpose.msra.mxu0 0
    %1529 = vmatprep.subr.bf16.mxu0 0
    %1530 = vmatpush1.bf16.xpose.msra.mxu0 0
    %1531 = vmatprep.subr.bf16.mxu0 0
    %1532 = vmatpush1.bf16.xpose.msra.mxu0 0
    %1533 = vmatprep.subr.bf16.mxu0 0
    %1534 = vmatpush1.bf16.xpose.msra.mxu0 0
    %1535 = vmatprep.subr.bf16.mxu0 0
    %1536 = vmatpush1.bf16.xpose.msra.mxu0 0
    %1537 = vmatprep.mubr.bf16.mxu0 0
    %1538 = vmatmul.mubr.bf16.gmra.mrb[0].mxu0 %v1497
    %v1539 = vpop.f32.mrb[0].mxu0
    %v1540 = vadd.f32 %v1483, %v1539
    %v1541 = vpop.f32.mrb[0].mxu0
    %v1542 = vpop.f32.mrb[0].mxu0
    %v1543 = vadd.f32 %v1483, %v1542
    %v1544 = vpop.f32.mrb[0].mxu0
    %1545 = vdwg.mxu0
    %v1546 = vadd.f32 %v1540, %v1327
    %v1547 = vadd.f32 %v1543, %v1328
    %v1548 = vld [vmem:[%s11] sm:$0x1]
    %v1549 = vld [vmem:[%s12] sm:$0x1]
    %v1550 = vsel %vm98, %v1546, 0.0
    %1551 = vadd.xlane.f32.xlu0 %v1550
    %v1552 = vpop.xlane.xlu0 %1551
    %v1553 = vsel %vm98, %v1547, 0.0
    %1554 = vadd.xlane.f32.xlu0 %v1553
    %v1555 = vpop.xlane.xlu0 %1554
    %v1556 = vmul.f32 %v1552, %v1292
    %v1557 = vmul.f32 %v1555, %v1292
    %v1558 = vsub.f32 %v1546, %v1556
    %v1559 = vsub.f32 %v1547, %v1557
    %v1560 = vmul.f32 %v1558, %v1558
    %v1561 = vmul.f32 %v1559, %v1559
    %v1562 = vsel %vm98, %v1560, 0.0
    %1563 = vadd.xlane.f32.xlu0 %v1562
    %v1564 = vpop.xlane.xlu0 %1563
    %v1565 = vsel %vm98, %v1561, 0.0
    %1566 = vadd.xlane.f32.xlu0 %v1565
    %v1567 = vpop.xlane.xlu0 %1566
    %v1568 = vmul.f32 %v1564, %v1292
    %v1569 = vmul.f32 %v1567, %v1292
    %v1570 = vadd.f32 %v1568, 1e-05
    %v1571 = vadd.f32 %v1569, 1e-05
    %v1572 = vrsqrt.pop %v1570
    %v1573 = vrsqrt.pop %v1571
    %v1574 = vmul.f32 %v1558, %v1572
    %v1575 = vmul.f32 %v1559, %v1573
    %v1577 = vlaneseq
    %v1578 = vshrl.u32 %v1577, 7
    %v1579 = vsub.s32 0, %v1578
    %v1580 = vrot.slane %v1548, %v1579
    %v1582 = vmul.f32 %v1574, %v1580
    %v1583 = vmul.f32 %v1575, %v1580
    %v1585 = vlaneseq
    %v1586 = vshrl.u32 %v1585, 7
    %v1587 = vsub.s32 0, %v1586
    %v1588 = vrot.slane %v1549, %v1587
    %v1590 = vadd.f32 %v1582, %v1588
    %v1591 = vadd.f32 %v1583, %v1588
    %1592 = vst.msk [vmem:[#allocation2] sm:$0xff] %vm98, %v1590
    %1593 = vst.msk [vmem:[#allocation2 + $0x8] sm:$0xff] %vm98, %v1591
    // Predicated region
    $region54: #{tpu_custom_call.1} parent=1 // pred_check
      _
    $region55: #{tpu_custom_call.1} parent=1 // pred_check_branch
      %1595 = sbr.rel (0) target = $region57
    $region56: #{tpu_custom_call.1} parent=1 // pred_region
      %s1597 = ssub.s32 256, 256
      %1598 = vsyncadd [#allocation3], %s1597
      %s1599 = sshll.u32 [#allocation2], 4
      %s1600 = int_to_ptr.vmem [resolvable:$true] %s1599
      %1605 = dma.vmem_to_hbm [thread:$0]  %s1600, 256, %s13, [#allocation3], 128, 128, 8
    $region57: #{tpu_custom_call.1} parent=1 // pred_fallthru
      _
    // Predicated region
    $region58: #{tpu_custom_call.1} parent=1 // pred_check
      _
    $region59: #{tpu_custom_call.1} parent=1 // pred_check_branch
      %1607 = sbr.rel (0) target = $region61
    $region60: #{tpu_custom_call.1} parent=1 // pred_region
      %1608 = dma.done [#allocation3], 256
    $region61: #{tpu_custom_call.1} parent=1 // pred_fallthru
      _
    %1609 = vsyncpa [#allocation3], 1

</llo_original>
